<compile_context>
chip_gen: v7x
topology: tpu7x:2x2x1
jax: 0.10.0
libtpu: 0.0.40
codegen_flags: <defaults>
</compile_context>

<pallas_src>
import functools

import jax
import jax.numpy as jnp
from jax.experimental import pallas as pl
from jax.experimental.pallas import tpu as pltpu

# Reduced from 512 so the example runs at small shapes; structure/semantics unchanged.
REFERENCE_RESIZE = 64
TEMPERATURE = 1e-10


# ----------------------------------------------------------------------------
# Generation-aware VMEM budgets
# ----------------------------------------------------------------------------

def _tpu_vmem_capacity_bytes():
    try:
        return int(pltpu.get_tpu_info().vmem_capacity_bytes)
    except Exception:
        return 64 * 1024 * 1024          # conservative (v7x-sized) fallback


_VMEM_CAP = _tpu_vmem_capacity_bytes()
# Tiling budget: ~58 MiB on 128 MiB parts (v5e/v6e), ~26 MiB on 64 MiB (v7x).
_TILE_BUDGET = max(min(_VMEM_CAP // 2 - (6 << 20), 64 << 20), 16 << 20)
_VMEM_LIMIT = int(min(_TILE_BUDGET + (16 << 20), _VMEM_CAP - (8 << 20)))


# ----------------------------------------------------------------------------
# Pallas kernel 1: fused (im2col-matmul + bias + activation) for every conv
# ----------------------------------------------------------------------------

def _fused_mm_kernel(a_ref, b_ref, bias_ref, o_ref, *, act, slope):
    acc = jnp.dot(a_ref[...], b_ref[...], preferred_element_type=jnp.float32)
    acc = acc + bias_ref[...]                       # (1, N) broadcast over (tm, N)
    if act == "relu":
        acc = jnp.maximum(acc, 0.0)
    elif act == "leaky":
        acc = jnp.where(acc >= 0.0, acc, jnp.float32(slope) * acc)
    o_ref[...] = acc.astype(o_ref.dtype)


def _pick_tm(M, K, Nc, budget):
    """Largest row tile dividing M whose VMEM footprint fits `budget`.

    Activations and outputs are double-buffered; the weight slab is
    single-buffered (pipeline_mode=pl.Buffered(1)); the bias block is tiny.
    """
    for t in (1024, 512, 256, 128, 64, 32, 16, 8):
        if M % t:
            continue
        vmem = 2 * (t * K * 2 + t * Nc * 4) + K * Nc * 2 + 8 * Nc * 4
        if vmem <= budget:
            return t
    return None


def fused_matmul(a_bf16, b_bf16, bias_f32, act=None, slope=0.2, out_dtype=jnp.float32):
    """(M,K)bf16 @ (K,N)bf16 + bias, optional activation, f32 accumulate."""
    M, K = a_bf16.shape
    Nc = b_bf16.shape[1]
    # Pad the (rare, tiny) odd-K case only; large convs stay pad-free.
    if K % 8 != 0:
        Kp = ((K + 7) // 8) * 8
        a_bf16 = jnp.pad(a_bf16, ((0, 0), (0, Kp - K)))
        b_bf16 = jnp.pad(b_bf16, ((0, Kp - K), (0, 0)))
        K = Kp
    orig_M = M
    tm = _pick_tm(M, K, Nc, _TILE_BUDGET)
    if tm is None:                                   # defensive: M not tileable
        Mp = ((M + 127) // 128) * 128
        a_bf16 = jnp.pad(a_bf16, ((0, Mp - M), (0, 0)))
        M = Mp
        tm = _pick_tm(M, K, Nc, _TILE_BUDGET) or 128

    kernel = functools.partial(_fused_mm_kernel, act=act, slope=slope)
    out = pl.pallas_call(
        kernel,
        out_shape=jax.ShapeDtypeStruct((M, Nc), out_dtype),
        grid_spec=pltpu.PrefetchScalarGridSpec(
            num_scalar_prefetch=0,
            grid=(M // tm,),
            in_specs=[
                # activations: streamed / double-buffered
                pl.BlockSpec((tm, K), lambda i: (i, 0)),
                # weights: grid-invariant -> single-buffered, resident
                pl.BlockSpec((K, Nc), lambda i: (0, 0),
                             pipeline_mode=pl.Buffered(1)),
                # bias: tiny, resident
                pl.BlockSpec((1, Nc), lambda i: (0, 0)),
            ],
            out_specs=pl.BlockSpec((tm, Nc), lambda i: (i, 0)),
        ),
        compiler_params=pltpu.CompilerParams(
            dimension_semantics=("parallel",),
            vmem_limit_bytes=_VMEM_LIMIT,
        ),
    )(a_bf16, b_bf16, bias_f32)
    return out[:orig_M] if orig_M != M else out


# ----------------------------------------------------------------------------
# Pallas kernel 2: non-local warp attention (similarity + 1/T softmax + gather)
# ----------------------------------------------------------------------------

def _warp_attn_kernel(thp_ref, phi_ref, blab_ref, out_ref, sim_ref):
    # thp: (1, tq, C) bf16 normalized theta rows; phi: (1, L, C) bf16; blab: (1, L, ch) f32.
    s = jax.lax.dot_general(
        thp_ref[0], phi_ref[0],
        dimension_numbers=(((1,), (1,)), ((), ())),
        preferred_element_type=jnp.float32)                       # (tq, L) f32
    m = jnp.max(s, axis=-1, keepdims=True)
    sim_ref[0] = m                                                # similarity map
    # softmax(s / T): subtract row max first, then scale; clamp the exponent so
    # the exp unit never sees ~-1e10 arguments (T = 1e-10 => effectively argmax).
    d = jnp.maximum((s - m) * jnp.float32(1.0 / TEMPERATURE), jnp.float32(-80.0))
    p = jnp.exp(d)
    p = p / jnp.sum(p, axis=-1, keepdims=True)
    out_ref[0] = jnp.dot(p, blab_ref[0], preferred_element_type=jnp.float32)


def warp_attention(theta, phi, blab):
    """theta/phi: (B,L,C) normalized, blab: (B,L,ch) -> (out (B,L,ch), sim (B,L,1))."""
    bsz, L, C = theta.shape
    ch = blab.shape[2]
    tq = 128 if (L % 128 == 0) else L
    out, sim = pl.pallas_call(
        _warp_attn_kernel,
        out_shape=(
            jax.ShapeDtypeStruct((bsz, L, ch), jnp.float32),
            jax.ShapeDtypeStruct((bsz, L, 1), jnp.float32),
        ),
        grid_spec=pltpu.PrefetchScalarGridSpec(
            num_scalar_prefetch=0,
            grid=(bsz, L // tq),
            in_specs=[
                pl.BlockSpec((1, tq, C), lambda b, i: (b, i, 0)),
                pl.BlockSpec((1, L, C), lambda b, i: (b, 0, 0)),
                pl.BlockSpec((1, L, ch), lambda b, i: (b, 0, 0)),
            ],
            out_specs=[
                pl.BlockSpec((1, tq, ch), lambda b, i: (b, i, 0)),
                pl.BlockSpec((1, tq, 1), lambda b, i: (b, i, 0)),
            ],
        ),
        compiler_params=pltpu.CompilerParams(
            dimension_semantics=("parallel", "parallel"),
            vmem_limit_bytes=_VMEM_LIMIT,
        ),
    )(theta.astype(jnp.bfloat16), phi.astype(jnp.bfloat16), blab.astype(jnp.float32))
    return out, sim


# ----------------------------------------------------------------------------
# Plain-JAX glue (all NHWC / channels-last)
# ----------------------------------------------------------------------------

def conv2d(x, p, stride=1, padding=0, dilation=1, act=None, slope=0.2):
    """x: (N,H,W,C); p['w']: (Cout,Cin,kh,kw) torch layout; bias+act fused.

    Output is bf16 for activation-fused convs (their consumer is another conv's
    bf16 im2col); f32 otherwise (instance-norm / residual-add / tanh consumers).
    """
    w = p["w"]
    b = p.get("b", None)
    N, H, W, C = x.shape
    Cout, Cin, kh, kw = w.shape
    if padding:
        x = jnp.pad(x, ((0, 0), (padding, padding), (padding, padding), (0, 0)))
    Hp, Wp = x.shape[1], x.shape[2]
    Ho = (Hp - dilation * (kh - 1) - 1) // stride + 1
    Wo = (Wp - dilation * (kw - 1) - 1) // stride + 1

    xb = x.astype(jnp.bfloat16)
    if kh == 1 and kw == 1 and stride == 1:
        col = xb.reshape(N * Ho * Wo, C)
    else:
        taps = []
        for i in range(kh):
            for j in range(kw):
                taps.append(xb[:, i * dilation: i * dilation + (Ho - 1) * stride + 1: stride,
                                  j * dilation: j * dilation + (Wo - 1) * stride + 1: stride, :])
        col = jnp.concatenate(taps, axis=-1).reshape(N * Ho * Wo, kh * kw * C)

    wm = jnp.transpose(w, (2, 3, 1, 0)).reshape(kh * kw * Cin, Cout).astype(jnp.bfloat16)
    bias = b if b is not None else jnp.zeros((Cout,), jnp.float32)
    bias = bias.reshape(1, Cout).astype(jnp.float32)

    # Lane-dense output path: pad small Cout to 128 with zero weight columns.
    Nc = Cout
    if Cout < 128:
        Nc = 128
        wm = jnp.pad(wm, ((0, 0), (0, Nc - Cout)))
        bias = jnp.pad(bias, ((0, 0), (0, Nc - Cout)))

    out_dtype = jnp.bfloat16 if act is not None else jnp.float32
    out = fused_matmul(col, wm, bias, act=act, slope=slope, out_dtype=out_dtype)
    if Nc != Cout:
        out = out[:, :Cout]
    return out.reshape(N, Ho, Wo, Cout)


def depthwise_ss(x, p):
    """Conv2d(C,C,1,stride=2,groups=C,bias=False): per-channel scale + subsample."""
    return x[:, ::2, ::2, :] * p["w"].reshape(1, 1, 1, -1)


def relu(x):
    return jnp.maximum(x, 0.0)


def prelu(x, a=0.25):
    return jnp.where(x >= 0, x, a * x)


def instance_norm(x, eps=1e-5):
    x = x.astype(jnp.float32)
    mean = x.mean(axis=(1, 2), keepdims=True)
    var = jnp.mean(jnp.square(x - mean), axis=(1, 2), keepdims=True)
    return (x - mean) * jax.lax.rsqrt(var + eps)


def reflect_pad1(x):
    return jnp.pad(x, ((0, 0), (1, 1), (1, 1), (0, 0)), mode="reflect")


def maxpool2(x):
    N, H, W, C = x.shape
    return jnp.max(x.reshape(N, H // 2, 2, W // 2, 2, C), axis=(2, 4))


def avg_pool(x, k):
    N, H, W, C = x.shape
    return x.reshape(N, H // k, k, W // k, k, C).mean(axis=(2, 4))


def upsample_nearest(x, s):
    return jnp.repeat(jnp.repeat(x, s, axis=1), s, axis=2)


def bilinear(x, out_h, out_w, align_corners):
    N, H, W, C = x.shape
    if align_corners:
        ys = jnp.linspace(0.0, H - 1.0, out_h) if out_h > 1 else jnp.zeros((out_h,), jnp.float32)
        xs = jnp.linspace(0.0, W - 1.0, out_w) if out_w > 1 else jnp.zeros((out_w,), jnp.float32)
    else:
        ys = jnp.clip((jnp.arange(out_h) + 0.5) * H / out_h - 0.5, 0.0, H - 1.0)
        xs = jnp.clip((jnp.arange(out_w) + 0.5) * W / out_w - 0.5, 0.0, W - 1.0)
    y0 = jnp.floor(ys).astype(jnp.int32)
    x0 = jnp.floor(xs).astype(jnp.int32)
    y1 = jnp.minimum(y0 + 1, H - 1)
    x1 = jnp.minimum(x0 + 1, W - 1)
    wy = (ys - y0).reshape(1, out_h, 1, 1)
    wx = (xs - x0).reshape(1, 1, out_w, 1)

    def gather(yi, xi):
        return x[:, yi, :, :][:, :, xi, :]

    top = gather(y0, x0) * (1 - wx) + gather(y0, x1) * wx
    bot = gather(y1, x0) * (1 - wx) + gather(y1, x1) * wx
    return top * (1 - wy) + bot * wy


def rgb2lab(rgb):
    rgb = jnp.clip(rgb, 0.0, 1.0)
    r, g, b = rgb[..., 0:1], rgb[..., 1:2], rgb[..., 2:3]

    def inv_gamma(c):
        return jnp.where(c > 0.04045, ((c + 0.055) / 1.055) ** 2.4, c / 12.92)

    rl, gl, bl = inv_gamma(r), inv_gamma(g), inv_gamma(b)
    x = rl * 0.412453 + gl * 0.357580 + bl * 0.180423
    y = rl * 0.212671 + gl * 0.715160 + bl * 0.072169
    z = rl * 0.019334 + gl * 0.119193 + bl * 0.950227
    xn, yn, zn = 0.950456, 1.0, 1.088754

    def f(t):
        return jnp.where(t > 0.008856, jnp.cbrt(jnp.maximum(t, 1e-8)), 7.787 * t + 16.0 / 116.0)

    fx, fy, fz = f(x / xn), f(y / yn), f(z / zn)
    L = 116.0 * fy - 16.0
    a = 500.0 * (fx - fy)
    bb = 200.0 * (fy - fz)
    return jnp.concatenate([L, a, bb], axis=-1)


def lab2rgb(lab):
    L, a, bb = lab[..., 0:1], lab[..., 1:2], lab[..., 2:3]
    fy = (L + 16.0) / 116.0
    fx = fy + a / 500.0
    fz = fy - bb / 200.0

    def finv(t):
        return jnp.where(t > 0.2068966, t ** 3, (t - 16.0 / 116.0) / 7.787)

    xn, yn, zn = 0.950456, 1.0, 1.088754
    x = finv(fx) * xn
    y = finv(fy) * yn
    z = finv(fz) * zn
    r = x * 3.240479 + y * (-1.537150) + z * (-0.498535)
    g = x * (-0.969256) + y * 1.875992 + z * 0.041556
    b = x * 0.055648 + y * (-0.204043) + z * 1.057311

    def gamma(c):
        return jnp.where(c > 0.0031308,
                         1.055 * jnp.power(jnp.maximum(c, 1e-8), 1.0 / 2.4) - 0.055,
                         12.92 * c)

    return jnp.concatenate([gamma(r), gamma(g), gamma(b)], axis=-1)


def vgg_preprocess(t):
    bgr = t[..., ::-1]
    mean = jnp.array([0.40760392, 0.45795686, 0.48501961], jnp.float32)
    return (bgr - mean) * 255.0


def feature_normalize(x):
    x = x.astype(jnp.float32)
    n = jnp.sqrt(jnp.sum(x * x, axis=-1, keepdims=True)) + 1e-6
    return x / n


# ----------------------------------------------------------------------------
# Deterministic parameter init (torch weight layout (Cout, Cin, kh, kw))
# ----------------------------------------------------------------------------

_BASE_KEY = jax.random.PRNGKey(0)
_KEY_CTR = [0]


def _next_key():
    _KEY_CTR[0] += 1
    return jax.random.fold_in(_BASE_KEY, _KEY_CTR[0])


def conv_params(cin, cout, k, bias=True):
    fan_in = cin * k * k
    std = (2.0 / fan_in) ** 0.5
    w = std * jax.random.normal(_next_key(), (cout, cin, k, k), jnp.float32)
    p = {"w": w}
    if bias:
        p["b"] = jnp.zeros((cout,), jnp.float32)
    return p


def dw_params(c):
    return {"w": jax.random.normal(_next_key(), (c, 1, 1, 1), jnp.float32)}


def init_vgg19():
    specs = [("conv1_1", 3, 64), ("conv1_2", 64, 64), ("conv2_1", 64, 128),
             ("conv2_2", 128, 128), ("conv3_1", 128, 256), ("conv3_2", 256, 256),
             ("conv3_3", 256, 256), ("conv3_4", 256, 256), ("conv4_1", 256, 512),
             ("conv4_2", 512, 512), ("conv4_3", 512, 512), ("conv4_4", 512, 512),
             ("conv5_1", 512, 512), ("conv5_2", 512, 512)]
    return {name: conv_params(ci, co, 3) for name, ci, co in specs}


def init_warp():
    p = {}
    p["layer2_1"] = [conv_params(128, 128, 3), conv_params(128, 64, 3)]
    p["layer3_1"] = [conv_params(256, 128, 3), conv_params(128, 64, 3)]
    p["layer4_1"] = [conv_params(512, 256, 3), conv_params(256, 64, 3)]
    p["layer5_1"] = [conv_params(512, 256, 3), conv_params(256, 64, 3)]
    p["res"] = [{"conv1": conv_params(256, 256, 3), "conv2": conv_params(256, 256, 3)}
                for _ in range(3)]
    p["theta"] = conv_params(256, 256, 1)
    p["phi"] = conv_params(256, 256, 1)
    return p


def init_color():
    p = {}
    p["conv1_1a"] = conv_params(7, 32, 3)
    p["conv1_1b"] = conv_params(32, 64, 3)
    p["conv1_2"] = conv_params(64, 64, 3)
    p["conv1_2norm_ss"] = dw_params(64)
    p["conv2_1"] = conv_params(64, 128, 3)
    p["conv2_2"] = conv_params(128, 128, 3)
    p["conv2_2norm_ss"] = dw_params(128)
    p["conv3_1"] = conv_params(128, 256, 3)
    p["conv3_2"] = conv_params(256, 256, 3)
    p["conv3_3"] = conv_params(256, 256, 3)
    p["conv3_3norm_ss"] = dw_params(256)
    p["conv4_1"] = conv_params(256, 512, 3)
    p["conv4_2"] = conv_params(512, 512, 3)
    p["conv4_3"] = conv_params(512, 512, 3)
    for blk in ("conv5", "conv6", "conv7"):
        for i in (1, 2, 3):
            p[f"{blk}_{i}"] = conv_params(512, 512, 3)
    p["conv8_1"] = conv_params(512, 256, 3)
    p["conv3_3_short"] = conv_params(256, 256, 3)
    p["conv8_2"] = conv_params(256, 256, 3)
    p["conv8_3"] = conv_params(256, 256, 3)
    p["conv9_1"] = conv_params(256, 128, 3)
    p["conv2_2_short"] = conv_params(128, 128, 3)
    p["conv9_2"] = conv_params(128, 128, 3)
    p["conv10_1"] = conv_params(128, 128, 3)
    p["conv1_2_short"] = conv_params(64, 128, 3)
    p["conv10_2"] = conv_params(128, 128, 3)
    p["conv10_ab"] = conv_params(128, 2, 1)
    return p


def init_video_color():
    return {
        "align": {"vgg": init_vgg19(), "warp": init_warp()},
        "color": init_color(),
        "A_last_lab": jnp.zeros((1, REFERENCE_RESIZE, REFERENCE_RESIZE, 3), jnp.float32),
    }


# ----------------------------------------------------------------------------
# Model forward passes (NHWC)
# ----------------------------------------------------------------------------

def vgg19_forward(p, x):
    x = vgg_preprocess(x)
    h = conv2d(x, p["conv1_1"], padding=1, act="relu")
    h = conv2d(h, p["conv1_2"], padding=1, act="relu")
    h = maxpool2(h)
    h = conv2d(h, p["conv2_1"], padding=1, act="relu")
    r22 = conv2d(h, p["conv2_2"], padding=1, act="relu")
    h = maxpool2(r22)
    h = conv2d(h, p["conv3_1"], padding=1, act="relu")
    r32 = conv2d(h, p["conv3_2"], padding=1, act="relu")
    h = conv2d(r32, p["conv3_3"], padding=1, act="relu")
    h = conv2d(h, p["conv3_4"], padding=1, act="relu")
    h = maxpool2(h)
    h = conv2d(h, p["conv4_1"], padding=1, act="relu")
    r42 = conv2d(h, p["conv4_2"], padding=1, act="relu")
    h = conv2d(r42, p["conv4_3"], padding=1, act="relu")
    h = conv2d(h, p["conv4_4"], padding=1, act="relu")
    h = maxpool2(h)
    h = conv2d(h, p["conv5_1"], padding=1, act="relu")
    r52 = conv2d(h, p["conv5_2"], padding=1, act="relu")
    return r22, r32, r42, r52


def _pad_conv_in_prelu(x, cp, stride=1):
    x = reflect_pad1(x)
    x = conv2d(x, cp, stride=stride, padding=0)   # bias fused; PReLU after IN
    x = instance_norm(x)
    return prelu(x)


def residual_block(x, p):
    out = _pad_conv_in_prelu(x, p["conv1"])
    out = reflect_pad1(out)
    out = conv2d(out, p["conv2"], padding=0)
    out = instance_norm(out)
    out = out + x
    return prelu(out)


def warp_forward(wp, IB_lab, AB_f2, AB_f3, AB_f4, AB_f5):
    """AB_f* carry the A-tower samples first and B-tower samples second (2*bsz)."""
    AB_f2, AB_f3, AB_f4, AB_f5 = map(feature_normalize, (AB_f2, AB_f3, AB_f4, AB_f5))
    bsz, channel = IB_lab.shape[0], IB_lab.shape[3]
    fh, fw = IB_lab.shape[1] // 4, IB_lab.shape[2] // 4

    def layer2_1(x):
        x = _pad_conv_in_prelu(x, wp["layer2_1"][0], 1)
        return _pad_conv_in_prelu(x, wp["layer2_1"][1], 2)

    def layer3_1(x):
        x = _pad_conv_in_prelu(x, wp["layer3_1"][0], 1)
        return _pad_conv_in_prelu(x, wp["layer3_1"][1], 1)

    def layer4_1(x):
        x = _pad_conv_in_prelu(x, wp["layer4_1"][0], 1)
        x = _pad_conv_in_prelu(x, wp["layer4_1"][1], 1)
        return upsample_nearest(x, 2)

    def layer5_1(x):
        x = _pad_conv_in_prelu(x, wp["layer5_1"][0], 1)
        x = upsample_nearest(x, 2)
        x = _pad_conv_in_prelu(x, wp["layer5_1"][1], 1)
        return upsample_nearest(x, 2)

    # A and B towers stay batched through the shared warp-subnet layers.
    f2, f3, f4, f5 = layer2_1(AB_f2), layer3_1(AB_f3), layer4_1(AB_f4), layer5_1(AB_f5)

    def res_layers(x):
        for rp in wp["res"]:
            x = residual_block(x, rp)
        return x

    AB_features = res_layers(jnp.concatenate([f2, f3, f4, f5], axis=-1))
    A_features, B_features = AB_features[:bsz], AB_features[bsz:]

    inter = 256
    # channels-last: (B, L, C) directly, no transposes needed.
    theta = conv2d(A_features, wp["theta"], padding=0).reshape(bsz, -1, inter)
    theta = theta - theta.mean(axis=1, keepdims=True)                       # over L
    theta = theta / (jnp.sqrt(jnp.sum(theta * theta, axis=2, keepdims=True)) + 1e-6)  # over C

    phi = conv2d(B_features, wp["phi"], padding=0).reshape(bsz, -1, inter)
    phi = phi - phi.mean(axis=1, keepdims=True)
    phi = phi / (jnp.sqrt(jnp.sum(phi * phi, axis=2, keepdims=True)) + 1e-6)

    B_lab_pool = avg_pool(IB_lab, 4).reshape(bsz, -1, channel)              # (B, L, ch)

    out, sim = warp_attention(theta, phi, B_lab_pool)                       # batched grid
    global_BA = out.reshape(bsz, fh, fw, channel)
    sim_map = sim.reshape(bsz, fh, fw, 1)
    return upsample_nearest(global_BA, 4), upsample_nearest(sim_map, 4)


def align_forward(ap, inp):
    A_rgb = inp[..., 0:3]
    B_rgb = inp[..., 3:6]
    A_lab = rgb2lab(A_rgb)
    B_lab = rgb2lab(B_rgb)
    # Batch the two identical feature towers: one VGG pass on [A; B].
    AB_rgb = jnp.concatenate([A_rgb, B_rgb], axis=0)
    f2, f3, f4, f5 = vgg19_forward(ap["vgg"], AB_rgb)
    global_lab, similarity = warp_forward(ap["warp"], B_lab, f2, f3, f4, f5)
    return jnp.concatenate([A_lab[..., 0:1], global_lab[..., 1:], similarity], axis=-1)


def color_forward(p, x):
    h = conv2d(x, p["conv1_1a"], padding=1, act="relu")
    conv1_1 = conv2d(h, p["conv1_1b"], padding=1, act="relu")
    conv1_2 = conv2d(conv1_1, p["conv1_2"], padding=1, act="relu")
    conv1_2norm = instance_norm(conv1_2)
    conv1_2norm_ss = depthwise_ss(conv1_2norm, p["conv1_2norm_ss"])
    conv2_1 = conv2d(conv1_2norm_ss, p["conv2_1"], padding=1, act="relu")
    conv2_2 = conv2d(conv2_1, p["conv2_2"], padding=1, act="relu")
    conv2_2norm = instance_norm(conv2_2)
    conv2_2norm_ss = depthwise_ss(conv2_2norm, p["conv2_2norm_ss"])
    conv3_1 = conv2d(conv2_2norm_ss, p["conv3_1"], padding=1, act="relu")
    conv3_2 = conv2d(conv3_1, p["conv3_2"], padding=1, act="relu")
    conv3_3 = conv2d(conv3_2, p["conv3_3"], padding=1, act="relu")
    conv3_3norm = instance_norm(conv3_3)
    conv3_3norm_ss = depthwise_ss(conv3_3norm, p["conv3_3norm_ss"])
    conv4_1 = conv2d(conv3_3norm_ss, p["conv4_1"], padding=1, act="relu")
    conv4_2 = conv2d(conv4_1, p["conv4_2"], padding=1, act="relu")
    conv4_3 = conv2d(conv4_2, p["conv4_3"], padding=1, act="relu")
    h = instance_norm(conv4_3)
    for blk in ("conv5", "conv6"):
        for i in (1, 2, 3):
            h = conv2d(h, p[f"{blk}_{i}"], padding=2, dilation=2, act="relu")
        h = instance_norm(h)
    for i in (1, 2, 3):
        h = conv2d(h, p[f"conv7_{i}"], padding=1, act="relu")
    conv7_3norm = instance_norm(h)
    conv8_1 = conv2d(upsample_nearest(conv7_3norm, 2), p["conv8_1"], padding=1)
    conv3_3_short = conv2d(conv3_3norm, p["conv3_3_short"], padding=1)
    conv8_1_comb = relu(conv8_1 + conv3_3_short)
    conv8_2 = conv2d(conv8_1_comb, p["conv8_2"], padding=1, act="relu")
    conv8_3 = conv2d(conv8_2, p["conv8_3"], padding=1, act="relu")
    conv8_3norm = instance_norm(conv8_3)
    conv9_1 = conv2d(upsample_nearest(conv8_3norm, 2), p["conv9_1"], padding=1)
    conv2_2_short = conv2d(conv2_2norm, p["conv2_2_short"], padding=1)
    conv9_1_comb = relu(conv9_1 + conv2_2_short)
    conv9_2 = conv2d(conv9_1_comb, p["conv9_2"], padding=1, act="relu")
    conv9_2norm = instance_norm(conv9_2)
    conv10_1 = conv2d(upsample_nearest(conv9_2norm, 2), p["conv10_1"], padding=1)
    conv1_2_short = conv2d(conv1_2norm, p["conv1_2_short"], padding=1)
    conv10_1_comb = relu(conv10_1 + conv1_2_short)
    conv10_2 = conv2d(conv10_1_comb, p["conv10_2"], padding=1, act="leaky", slope=0.2)
    conv10_ab = conv2d(conv10_2, p["conv10_ab"], padding=0)
    return jnp.tanh(conv10_ab) * 128.0


def forward_x(params, x, B_rgb):
    R = REFERENCE_RESIZE
    H, W = B_rgb.shape[1], B_rgb.shape[2]
    if H != R or W != R:
        B_rgb = bilinear(B_rgb, R, R, align_corners=True)
    A_rgb = bilinear(x, R, R, align_corners=True)
    _ = rgb2lab(A_rgb)  # only used for the (non-persisted) stateful buffer update
    align_input = jnp.concatenate([A_rgb, B_rgb], axis=-1)
    align_output = align_forward(params["align"], align_input)
    color_input = jnp.concatenate([align_output, params["A_last_lab"]], axis=-1)
    color_output_ab = color_forward(params["color"], color_input)
    H, W = x.shape[1], x.shape[2]
    color_output_ab = bilinear(color_output_ab, H, W, align_corners=True)
    input_lab = rgb2lab(x)
    output_lab = jnp.concatenate([input_lab[..., 0:1], color_output_ab], axis=-1)
    output_rgb = lab2rgb(output_lab)
    return jnp.clip(output_rgb, 0.0, 1.0)


def video_color_forward(params, x_nchw, B_rgb_nchw):
    x = jnp.transpose(x_nchw, (0, 2, 3, 1))
    B_rgb = jnp.transpose(B_rgb_nchw, (0, 2, 3, 1))
    max_h, max_w, multi = 1024, 1024, 2
    _, H, W, _ = x.shape
    if H > max_h or W > max_w:
        s = min(max_h / H, max_w / W)
        SH, SW = int(s * H), int(s * W)
        resize_x = bilinear(x, SH, SW, align_corners=False)
    else:
        resize_x = x
    PH, PW = resize_x.shape[1], resize_x.shape[2]
    if PH % multi != 0 or PW % multi != 0:
        r_pad = multi - PW % multi
        b_pad = multi - PH % multi
        resize_pad_x = jnp.pad(resize_x, ((0, 0), (0, b_pad), (0, r_pad), (0, 0)), mode="edge")
    else:
        resize_pad_x = resize_x
    y = forward_x(params, resize_pad_x, B_rgb)
    y = y[:, 0:PH, 0:PW, :]
    if PH != H or PW != W:
        y = bilinear(y, H, W, align_corners=False)
    return jnp.transpose(y, (0, 3, 1, 2))


# ----------------------------------------------------------------------------
if __name__ == "__main__":
    params = init_video_color()
    key = jax.random.PRNGKey(0)
    k1, k2 = jax.random.split(key)
    x = jax.random.uniform(k1, (1, 3, 32, 32), jnp.float32)                       # video frame
    B_rgb = jax.random.uniform(k2, (1, 3, REFERENCE_RESIZE, REFERENCE_RESIZE), jnp.float32)  # reference
    out = video_color_forward(params, x, B_rgb)
    out = jax.block_until_ready(out)
    assert out.shape == (1, 3, 32, 32)
    assert bool(jnp.all(jnp.isfinite(out)))
    print("KERNEL_OK")
</pallas_src>

<mosaic_0001>
module attributes {stable_mosaic.version = 11 : i64} {
  func.func @_fused_mm_kernel(%arg0: i32, %arg1: memref<1024x32xbf16, #tpu.memory_space<vmem>>, %arg2: memref<32x128xbf16, #tpu.memory_space<vmem>>, %arg3: memref<1x128xf32, #tpu.memory_space<vmem>>, %arg4: memref<1024x128xbf16, #tpu.memory_space<vmem>>) attributes {dimension_semantics = [#tpu.dimension_semantics<parallel>], iteration_bounds = array<i64: 8>, scalar_prefetch = 0 : i64, scratch_operands = 0 : i64, tpu.core_type = #tpu.core_type<tc>, window_params = [{transform_indices = @transform_0, window_bounds = array<i64: 1024, 32>}, {pipeline_mode = #tpu.pipeline_mode<synchronous>, transform_indices = @transform_1, window_bounds = array<i64: 32, 128>}, {pipeline_mode = #tpu.pipeline_mode<synchronous>, transform_indices = @transform_2, window_bounds = array<i64: 1, 128>}, {transform_indices = @transform_3, window_bounds = array<i64: 1024, 128>}]} {
    %c0 = arith.constant 0 : index
    %c0_0 = arith.constant 0 : index
    %0 = vector.load %arg1[%c0, %c0_0] : memref<1024x32xbf16, #tpu.memory_space<vmem>>, vector<1024x32xbf16>
    %c0_1 = arith.constant 0 : index
    %c0_2 = arith.constant 0 : index
    %1 = vector.load %arg2[%c0_1, %c0_2] : memref<32x128xbf16, #tpu.memory_space<vmem>>, vector<32x128xbf16>
    %cst = arith.constant dense<0.000000e+00> : vector<1024x128xf32>
    %2 = tpu.matmul %0, %1, %cst {dimension_numbers = #tpu.dot_dimension_numbers<[1], [0], [0], [1], [0, 0, 1, 1], [], []>} : vector<1024x32xbf16>, vector<32x128xbf16>, vector<1024x128xf32> -> vector<1024x128xf32>
    %c0_3 = arith.constant 0 : index
    %c0_4 = arith.constant 0 : index
    %3 = vector.load %arg3[%c0_3, %c0_4] : memref<1x128xf32, #tpu.memory_space<vmem>>, vector<1x128xf32>
    %4 = vector.broadcast %3 : vector<1x128xf32> to vector<1024x128xf32>
    %5 = arith.addf %2, %4 : vector<1024x128xf32>
    %cst_5 = arith.constant 0.000000e+00 : f32
    %6 = vector.broadcast %cst_5 : f32 to vector<1024x128xf32>
    %7 = arith.maximumf %5, %6 : vector<1024x128xf32>
    %8 = arith.truncf %7 : vector<1024x128xf32> to vector<1024x128xbf16>
    %c0_6 = arith.constant 0 : index
    %c0_7 = arith.constant 0 : index
    %9 = vector.load %arg4[%c0_6, %c0_7] : memref<1024x128xbf16, #tpu.memory_space<vmem>>, vector<1024x128xbf16>
    tpu.vector_store %arg4[%c0_6, %c0_7], %8 {strides = array<i32>} : memref<1024x128xbf16, #tpu.memory_space<vmem>>, vector<1024x128xbf16>,
    return
  }
  func.func @transform_0(%arg0: i32) -> (i32, i32) {
    %c0_i32 = arith.constant 0 : i32
    %c0_i32_0 = arith.constant 0 : i32
    return %arg0, %c0_i32 : i32, i32
  }
  func.func @transform_1(%arg0: i32) -> (i32, i32) {
    %c0_i32 = arith.constant 0 : i32
    %c0_i32_0 = arith.constant 0 : i32
    %c0_i32_1 = arith.constant 0 : i32
    return %c0_i32, %c0_i32_0 : i32, i32
  }
  func.func @transform_2(%arg0: i32) -> (i32, i32) {
    %c0_i32 = arith.constant 0 : i32
    %c0_i32_0 = arith.constant 0 : i32
    %c0_i32_1 = arith.constant 0 : i32
    return %c0_i32, %c0_i32_0 : i32, i32
  }
  func.func @transform_3(%arg0: i32) -> (i32, i32) {
    %c0_i32 = arith.constant 0 : i32
    %c0_i32_0 = arith.constant 0 : i32
    return %arg0, %c0_i32 : i32, i32
  }
}

</mosaic_0001>

<llo_original>
// kernel: tpu_custom_call.1
$region0: #{tpu_custom_call.1}
  #allocation0 [shape = 'u32[]', space=smem, size = 0x4, offset = 0x4, fixed_abs, tag = 'smem constant byte address 0x4 - core index']
  #allocation1 [shape = 'u32[144,128]{1,0:T(1,128)}', space=vmem, size = 0x12000, scoped, tag = 'internal scratch']
  %s0 = inlined_call_operand.vmem [shape: bf16[8192,32], index: 0, kind: input, shape index: {}]
  %s1 = inlined_call_operand.vmem [shape: bf16[32,128], index: 1, kind: input, shape index: {}]
  %s2 = inlined_call_operand.vmem [shape: f32[1,128], index: 2, kind: input, shape index: {}]
  %s3 = inlined_call_operand.hbm [shape: bf16[8192,128], index: 3, kind: output, shape index: {}]
  %s4 = sld [smem:[#allocation0]]
  $region45: #{tpu_custom_call.1} parent=0
    _
  %s6 = ssub.s32 1, %s4
  %s7 = scalar_select 0, %s6, %s4
  $region1: #{tpu_custom_call.1} parent=0
    #allocation2 [shape = 'u8[524288]{0}', space=vmem, size = 0x80000, scoped, tag = 'output window, operand 0']
    #allocation3 [shape = 's32[2]{0}', space=sflag, size = 0x8, scoped, tag = 'scoped memory for tpu_custom_call.1']
    %8 = vsyncpa [#allocation3], 0
    %s9 = scalar_lea.sflag [#allocation3], 1
    %10 = vsyncpa %s9, 0
    loop: start=0, step=1, limit=10
    $region2: #{tpu_custom_call.1} parent=1 // loop_pre_header
      _
    $region3: #{tpu_custom_call.1} parent=1 // loop_header
      %s12 = sphi 0, %s16
      %p13 = scmp.ge.s32.totalorder %s12, 10
      %s22 = sphi 0, %s24
      %s25 = sphi 0, %s22
      %s26 = sphi 0, %s25
      %s42 = sphi 0, %s26
      %s46 = sphi 0, %s46
      %s48 = sphi 0, %s46
      %s49 = sphi 0, %s48
      %s63 = sphi 0, %s49
      %s67 = sphi 0, %s67
      %s69 = sphi 0, %s67
      %s70 = sphi 0, %s69
      %s84 = sphi 0, %s70
      %s90 = sphi 0, %s92
      %s93 = sphi 0, %s90
      %s94 = sphi 0, %s93
      %s110 = sphi 0, %s94
    $region4: #{tpu_custom_call.1} parent=1 // loop_header_branch
      %15 = sbr.rel (%p13) target = $region8
    $region5: #{tpu_custom_call.1} parent=1 // loop_body
      %s17 = ssub.s32 %s12, 1
      %s18 = ssub.s32 %s12, 2
      %s19 = sadd.s32 %s12, 1
      %s20 = ssub.s32 %s12, %s19
      %p21 = scmp.eq.s32.totalorder %s20, 0
      %s23 = sadd.s32 %s22, 1
      %s24 = scalar_select %p21, %s22, %s23
      %p27 = pneg %p21
      %p28 = scmp.eq.s32.totalorder %s12, 7
      %p29 = por %p27, %p28
      %p30 = scmp.ne.s32.totalorder %s22, %s25
      %p31 = scmp.eq.s32.totalorder %s12, 0
      %p32 = por %p30, %p31
      %p33 = scmp.ne.s32.totalorder %s22, %s25
      %p34 = scmp.eq.s32.totalorder %s17, 7
      %p35 = por %p33, %p34
      %p36 = scmp.ne.s32.totalorder %s25, %s26
      %p37 = scmp.eq.s32.totalorder %s17, 0
      %p38 = por %p36, %p37
      %p39 = scmp.ne.s32.totalorder %s25, %s26
      %p40 = scmp.eq.s32.totalorder %s18, 7
      %p41 = por %p39, %p40
      %p43 = scmp.ne.s32.totalorder %s26, %s42
      %p44 = scmp.eq.s32.totalorder %s18, 0
      %p45 = por %p43, %p44
      %s47 = sadd.s32 %s46, 1
      %p50 = scmp.eq.s32.totalorder %s12, 7
      %p51 = scmp.ne.s32.totalorder %s46, %s48
      %p52 = scmp.eq.s32.totalorder %s12, 0
      %p53 = por %p51, %p52
      %p54 = scmp.ne.s32.totalorder %s46, %s48
      %p55 = scmp.eq.s32.totalorder %s17, 7
      %p56 = por %p54, %p55
      %p57 = scmp.ne.s32.totalorder %s48, %s49
      %p58 = scmp.eq.s32.totalorder %s17, 0
      %p59 = por %p57, %p58
      %p60 = scmp.ne.s32.totalorder %s48, %s49
      %p61 = scmp.eq.s32.totalorder %s18, 7
      %p62 = por %p60, %p61
      %p64 = scmp.ne.s32.totalorder %s49, %s63
      %p65 = scmp.eq.s32.totalorder %s18, 0
      %p66 = por %p64, %p65
      %s68 = sadd.s32 %s67, 1
      %p71 = scmp.eq.s32.totalorder %s12, 7
      %p72 = scmp.ne.s32.totalorder %s67, %s69
      %p73 = scmp.eq.s32.totalorder %s12, 0
      %p74 = por %p72, %p73
      %p75 = scmp.ne.s32.totalorder %s67, %s69
      %p76 = scmp.eq.s32.totalorder %s17, 7
      %p77 = por %p75, %p76
      %p78 = scmp.ne.s32.totalorder %s69, %s70
      %p79 = scmp.eq.s32.totalorder %s17, 0
      %p80 = por %p78, %p79
      %p81 = scmp.ne.s32.totalorder %s69, %s70
      %p82 = scmp.eq.s32.totalorder %s18, 7
      %p83 = por %p81, %p82
      %p85 = scmp.ne.s32.totalorder %s70, %s84
      %p86 = scmp.eq.s32.totalorder %s18, 0
      %p87 = por %p85, %p86
      %s88 = ssub.s32 %s12, %s19
      %p89 = scmp.eq.s32.totalorder %s88, 0
      %s91 = sadd.s32 %s90, 1
      %s92 = scalar_select %p89, %s90, %s91
      %p95 = pneg %p89
      %p96 = scmp.eq.s32.totalorder %s12, 7
      %p97 = por %p95, %p96
      %p98 = scmp.ne.s32.totalorder %s90, %s93
      %p99 = scmp.eq.s32.totalorder %s12, 0
      %p100 = por %p98, %p99
      %p101 = scmp.ne.s32.totalorder %s90, %s93
      %p102 = scmp.eq.s32.totalorder %s17, 7
      %p103 = por %p101, %p102
      %p104 = scmp.ne.s32.totalorder %s93, %s94
      %p105 = scmp.eq.s32.totalorder %s17, 0
      %p106 = por %p104, %p105
      %p107 = scmp.ne.s32.totalorder %s93, %s94
      %p108 = scmp.eq.s32.totalorder %s18, 7
      %p109 = por %p107, %p108
      %p111 = scmp.ne.s32.totalorder %s94, %s110
      %p112 = scmp.eq.s32.totalorder %s18, 0
      %p113 = por %p111, %p112
      %p114 = scmp.le.s32.totalorder 1, %s12
      %p115 = scmp.lt.s32.totalorder %s12, 9
      %p116 = pnand %p114, %p115
      %p117 = pneg %p116
      // Predicated region
      $region9: #{tpu_custom_call.1} parent=5 // pred_check
        _
      $region10: #{tpu_custom_call.1} parent=5 // pred_check_branch
        %119 = sbr.rel (%p116) target = $region12
      $region11: #{tpu_custom_call.1} parent=5 // pred_region
        %s120 = ssub.s32 %s12, 1
        // Predicated region
        $region13: #{tpu_custom_call.1} parent=11 // pred_check
          %p121 = pneg %p59
        $region14: #{tpu_custom_call.1} parent=11 // pred_check_branch
          %123 = sbr.rel (%p121) target = $region16
        $region15: #{tpu_custom_call.1} parent=11 // pred_region
          _
        $region16: #{tpu_custom_call.1} parent=11 // pred_fallthru
          _
        // Predicated region
        $region17: #{tpu_custom_call.1} parent=11 // pred_check
          %p124 = pneg %p80
        $region18: #{tpu_custom_call.1} parent=11 // pred_check_branch
          %126 = sbr.rel (%p124) target = $region20
        $region19: #{tpu_custom_call.1} parent=11 // pred_region
          _
        $region20: #{tpu_custom_call.1} parent=11 // pred_fallthru
          _
      $region12: #{tpu_custom_call.1} parent=5 // pred_fallthru
        _
      %p127 = scmp.lt.s32.totalorder %s12, 8
      // Predicated region
      $region21: #{tpu_custom_call.1} parent=5 // pred_check
        %p128 = pneg %p127
      $region22: #{tpu_custom_call.1} parent=5 // pred_check_branch
        %130 = sbr.rel (%p128) target = $region24
      $region23: #{tpu_custom_call.1} parent=5 // pred_region
        // Predicated region
        $region25: #{tpu_custom_call.1} parent=23 // pred_check
          %p131 = pneg %p32
        $region26: #{tpu_custom_call.1} parent=23 // pred_check_branch
          %133 = sbr.rel (%p131) target = $region28
        $region27: #{tpu_custom_call.1} parent=23 // pred_region
          %s134 = smul.u32 128, %s12
          %p135 = scmp.lt.s32.totalorder %s134, 1023
          %s136 = scalar_select %p135, %s134, 1023
          %s137 = smul.addr %s136, 4
          %s138 = scalar_lea.vmem %s0, %s137
          %s139 = smul.u32 128, %s12
        $region28: #{tpu_custom_call.1} parent=23 // pred_fallthru
          _
      $region24: #{tpu_custom_call.1} parent=5 // pred_fallthru
        _
      %p140 = scmp.le.s32.totalorder 1, %s12
      %p141 = scmp.lt.s32.totalorder %s12, 9
      %p142 = pnand %p140, %p141
      %p143 = pneg %p142
      // Predicated region
      $region29: #{tpu_custom_call.1} parent=5 // pred_check
        _
      $region30: #{tpu_custom_call.1} parent=5 // pred_check_branch
        %145 = sbr.rel (%p142) target = $region32
      $region31: #{tpu_custom_call.1} parent=5 // pred_region
        %s146 = ssub.s32 %s12, 1
        %s147 = smul.u32 128, %s17
        %p148 = scmp.lt.s32.totalorder %s147, 1023
        %s149 = scalar_select %p148, %s147, 1023
        %s150 = smul.addr %s149, 4
        %s151 = scalar_lea.vmem %s0, %s150
        %p152 = pneg %p38
        %p153 = pneg %p35
        %p154 = pneg %p59
        %p155 = pneg %p56
        %p156 = pneg %p80
        %p157 = pneg %p77
        %p158 = pneg %p106
        %p159 = pneg %p103
        %s160 = sand.u32 %s93, 1
        %s161 = scalar_lea.sflag [#allocation3], %s160
        %s162 = sand.u32 %s93, 1
        %s163 = smul.addr %s162, 512
        %s164 = scalar_lea.vmem [#allocation2], %s163
        %s165 = smul.u32 128, %s17
        %p166 = scmp.lt.s32.totalorder %s165, 1023
        %s167 = scalar_select %p166, %s165, 1023
        %s168 = smul.addr %s167, 4
        %s169 = scalar_lea.vmem %s0, %s168
        %s170 = smul.u32 128, %s17
        %s171 = smul.u32 128, %s17
        %v173 = vld [vmem:[%s169] sm:$0xf]
        %v174 = vld [vmem:[%s169 + $0x4] sm:$0xf]
        %v175 = vld [vmem:[%s169 + $0x8] sm:$0xf]
        %v176 = vld [vmem:[%s169 + $0xc] sm:$0xf]
        %v177 = vld [vmem:[%s169 + $0x10] sm:$0xf]
        %v178 = vld [vmem:[%s169 + $0x14] sm:$0xf]
        %v179 = vld [vmem:[%s169 + $0x18] sm:$0xf]
        %v180 = vld [vmem:[%s169 + $0x1c] sm:$0xf]
        %v181 = vld [vmem:[%s169 + $0x20] sm:$0xf]
        %v182 = vld [vmem:[%s169 + $0x24] sm:$0xf]
        %v183 = vld [vmem:[%s169 + $0x28] sm:$0xf]
        %v184 = vld [vmem:[%s169 + $0x2c] sm:$0xf]
        %v185 = vld [vmem:[%s169 + $0x30] sm:$0xf]
        %v186 = vld [vmem:[%s169 + $0x34] sm:$0xf]
        %v187 = vld [vmem:[%s169 + $0x38] sm:$0xf]
        %v188 = vld [vmem:[%s169 + $0x3c] sm:$0xf]
        %v189 = vld [vmem:[%s169 + $0x40] sm:$0xf]
        %v190 = vld [vmem:[%s169 + $0x44] sm:$0xf]
        %v191 = vld [vmem:[%s169 + $0x48] sm:$0xf]
        %v192 = vld [vmem:[%s169 + $0x4c] sm:$0xf]
        %v193 = vld [vmem:[%s169 + $0x50] sm:$0xf]
        %v194 = vld [vmem:[%s169 + $0x54] sm:$0xf]
        %v195 = vld [vmem:[%s169 + $0x58] sm:$0xf]
        %v196 = vld [vmem:[%s169 + $0x5c] sm:$0xf]
        %v197 = vld [vmem:[%s169 + $0x60] sm:$0xf]
        %v198 = vld [vmem:[%s169 + $0x64] sm:$0xf]
        %v199 = vld [vmem:[%s169 + $0x68] sm:$0xf]
        %v200 = vld [vmem:[%s169 + $0x6c] sm:$0xf]
        %v201 = vld [vmem:[%s169 + $0x70] sm:$0xf]
        %v202 = vld [vmem:[%s169 + $0x74] sm:$0xf]
        %v203 = vld [vmem:[%s169 + $0x78] sm:$0xf]
        %v204 = vld [vmem:[%s169 + $0x7c] sm:$0xf]
        %v205 = vld [vmem:[%s169 + $0x80] sm:$0xf]
        %v206 = vld [vmem:[%s169 + $0x84] sm:$0xf]
        %v207 = vld [vmem:[%s169 + $0x88] sm:$0xf]
        %v208 = vld [vmem:[%s169 + $0x8c] sm:$0xf]
        %v209 = vld [vmem:[%s169 + $0x90] sm:$0xf]
        %v210 = vld [vmem:[%s169 + $0x94] sm:$0xf]
        %v211 = vld [vmem:[%s169 + $0x98] sm:$0xf]
        %v212 = vld [vmem:[%s169 + $0x9c] sm:$0xf]
        %v213 = vld [vmem:[%s169 + $0xa0] sm:$0xf]
        %v214 = vld [vmem:[%s169 + $0xa4] sm:$0xf]
        %v215 = vld [vmem:[%s169 + $0xa8] sm:$0xf]
        %v216 = vld [vmem:[%s169 + $0xac] sm:$0xf]
        %v217 = vld [vmem:[%s169 + $0xb0] sm:$0xf]
        %v218 = vld [vmem:[%s169 + $0xb4] sm:$0xf]
        %v219 = vld [vmem:[%s169 + $0xb8] sm:$0xf]
        %v220 = vld [vmem:[%s169 + $0xbc] sm:$0xf]
        %v221 = vld [vmem:[%s169 + $0xc0] sm:$0xf]
        %v222 = vld [vmem:[%s169 + $0xc4] sm:$0xf]
        %v223 = vld [vmem:[%s169 + $0xc8] sm:$0xf]
        %v224 = vld [vmem:[%s169 + $0xcc] sm:$0xf]
        %v225 = vld [vmem:[%s169 + $0xd0] sm:$0xf]
        %v226 = vld [vmem:[%s169 + $0xd4] sm:$0xf]
        %v227 = vld [vmem:[%s169 + $0xd8] sm:$0xf]
        %v228 = vld [vmem:[%s169 + $0xdc] sm:$0xf]
        %v229 = vld [vmem:[%s169 + $0xe0] sm:$0xf]
        %v230 = vld [vmem:[%s169 + $0xe4] sm:$0xf]
        %v231 = vld [vmem:[%s169 + $0xe8] sm:$0xf]
        %v232 = vld [vmem:[%s169 + $0xec] sm:$0xf]
        %v233 = vld [vmem:[%s169 + $0xf0] sm:$0xf]
        %v234 = vld [vmem:[%s169 + $0xf4] sm:$0xf]
        %v235 = vld [vmem:[%s169 + $0xf8] sm:$0xf]
        %v236 = vld [vmem:[%s169 + $0xfc] sm:$0xf]
        %v237 = vld [vmem:[%s169 + $0x100] sm:$0xf]
        %v238 = vld [vmem:[%s169 + $0x104] sm:$0xf]
        %v239 = vld [vmem:[%s169 + $0x108] sm:$0xf]
        %v240 = vld [vmem:[%s169 + $0x10c] sm:$0xf]
        %v241 = vld [vmem:[%s169 + $0x110] sm:$0xf]
        %v242 = vld [vmem:[%s169 + $0x114] sm:$0xf]
        %v243 = vld [vmem:[%s169 + $0x118] sm:$0xf]
        %v244 = vld [vmem:[%s169 + $0x11c] sm:$0xf]
        %v245 = vld [vmem:[%s169 + $0x120] sm:$0xf]
        %v246 = vld [vmem:[%s169 + $0x124] sm:$0xf]
        %v247 = vld [vmem:[%s169 + $0x128] sm:$0xf]
        %v248 = vld [vmem:[%s169 + $0x12c] sm:$0xf]
        %v249 = vld [vmem:[%s169 + $0x130] sm:$0xf]
        %v250 = vld [vmem:[%s169 + $0x134] sm:$0xf]
        %v251 = vld [vmem:[%s169 + $0x138] sm:$0xf]
        %v252 = vld [vmem:[%s169 + $0x13c] sm:$0xf]
        %v253 = vld [vmem:[%s169 + $0x140] sm:$0xf]
        %v254 = vld [vmem:[%s169 + $0x144] sm:$0xf]
        %v255 = vld [vmem:[%s169 + $0x148] sm:$0xf]
        %v256 = vld [vmem:[%s169 + $0x14c] sm:$0xf]
        %v257 = vld [vmem:[%s169 + $0x150] sm:$0xf]
        %v258 = vld [vmem:[%s169 + $0x154] sm:$0xf]
        %v259 = vld [vmem:[%s169 + $0x158] sm:$0xf]
        %v260 = vld [vmem:[%s169 + $0x15c] sm:$0xf]
        %v261 = vld [vmem:[%s169 + $0x160] sm:$0xf]
        %v262 = vld [vmem:[%s169 + $0x164] sm:$0xf]
        %v263 = vld [vmem:[%s169 + $0x168] sm:$0xf]
        %v264 = vld [vmem:[%s169 + $0x16c] sm:$0xf]
        %v265 = vld [vmem:[%s169 + $0x170] sm:$0xf]
        %v266 = vld [vmem:[%s169 + $0x174] sm:$0xf]
        %v267 = vld [vmem:[%s169 + $0x178] sm:$0xf]
        %v268 = vld [vmem:[%s169 + $0x17c] sm:$0xf]
        %v269 = vld [vmem:[%s169 + $0x180] sm:$0xf]
        %v270 = vld [vmem:[%s169 + $0x184] sm:$0xf]
        %v271 = vld [vmem:[%s169 + $0x188] sm:$0xf]
        %v272 = vld [vmem:[%s169 + $0x18c] sm:$0xf]
        %v273 = vld [vmem:[%s169 + $0x190] sm:$0xf]
        %v274 = vld [vmem:[%s169 + $0x194] sm:$0xf]
        %v275 = vld [vmem:[%s169 + $0x198] sm:$0xf]
        %v276 = vld [vmem:[%s169 + $0x19c] sm:$0xf]
        %v277 = vld [vmem:[%s169 + $0x1a0] sm:$0xf]
        %v278 = vld [vmem:[%s169 + $0x1a4] sm:$0xf]
        %v279 = vld [vmem:[%s169 + $0x1a8] sm:$0xf]
        %v280 = vld [vmem:[%s169 + $0x1ac] sm:$0xf]
        %v281 = vld [vmem:[%s169 + $0x1b0] sm:$0xf]
        %v282 = vld [vmem:[%s169 + $0x1b4] sm:$0xf]
        %v283 = vld [vmem:[%s169 + $0x1b8] sm:$0xf]
        %v284 = vld [vmem:[%s169 + $0x1bc] sm:$0xf]
        %v285 = vld [vmem:[%s169 + $0x1c0] sm:$0xf]
        %v286 = vld [vmem:[%s169 + $0x1c4] sm:$0xf]
        %v287 = vld [vmem:[%s169 + $0x1c8] sm:$0xf]
        %v288 = vld [vmem:[%s169 + $0x1cc] sm:$0xf]
        %v289 = vld [vmem:[%s169 + $0x1d0] sm:$0xf]
        %v290 = vld [vmem:[%s169 + $0x1d4] sm:$0xf]
        %v291 = vld [vmem:[%s169 + $0x1d8] sm:$0xf]
        %v292 = vld [vmem:[%s169 + $0x1dc] sm:$0xf]
        %v293 = vld [vmem:[%s169 + $0x1e0] sm:$0xf]
        %v294 = vld [vmem:[%s169 + $0x1e4] sm:$0xf]
        %v295 = vld [vmem:[%s169 + $0x1e8] sm:$0xf]
        %v296 = vld [vmem:[%s169 + $0x1ec] sm:$0xf]
        %v297 = vld [vmem:[%s169 + $0x1f0] sm:$0xf]
        %v298 = vld [vmem:[%s169 + $0x1f4] sm:$0xf]
        %v299 = vld [vmem:[%s169 + $0x1f8] sm:$0xf]
        %v300 = vld [vmem:[%s169 + $0x1fc] sm:$0xf]
        %v301 = vld [vmem:[%s1] sm:$0xf]
        %v302 = vld [vmem:[%s1 + $0x4] sm:$0xf]
        %v303 = vld [vmem:[%s1 + $0x8] sm:$0xf]
        %v304 = vld [vmem:[%s1 + $0xc] sm:$0xf]
        %v305 = vld [vmem:[%s2] sm:$0x1]
        %v307 = vlaneseq
        %v308 = vshrl.u32 %v307, 7
        %v309 = vsub.s32 0, %v308
        %v310 = vrot.slane %v305, %v309
        %v440 = vunpack.c.l.b16 %v173
        %v441 = vunpack.c.l.b16 %v174
        %v442 = vunpack.c.l.b16 %v175
        %v443 = vunpack.c.l.b16 %v176
        %v444 = vunpack.c.l.b16 %v177
        %v445 = vunpack.c.l.b16 %v178
        %v446 = vunpack.c.l.b16 %v179
        %v447 = vunpack.c.l.b16 %v180
        %v448 = vunpack.c.l.b16 %v181
        %v449 = vunpack.c.l.b16 %v182
        %v450 = vunpack.c.l.b16 %v183
        %v451 = vunpack.c.l.b16 %v184
        %v452 = vunpack.c.l.b16 %v185
        %v453 = vunpack.c.l.b16 %v186
        %v454 = vunpack.c.l.b16 %v187
        %v455 = vunpack.c.l.b16 %v188
        %v456 = vunpack.c.l.b16 %v189
        %v457 = vunpack.c.l.b16 %v190
        %v458 = vunpack.c.l.b16 %v191
        %v459 = vunpack.c.l.b16 %v192
        %v460 = vunpack.c.l.b16 %v193
        %v461 = vunpack.c.l.b16 %v194
        %v462 = vunpack.c.l.b16 %v195
        %v463 = vunpack.c.l.b16 %v196
        %v464 = vunpack.c.l.b16 %v197
        %v465 = vunpack.c.l.b16 %v198
        %v466 = vunpack.c.l.b16 %v199
        %v467 = vunpack.c.l.b16 %v200
        %v468 = vunpack.c.l.b16 %v201
        %v469 = vunpack.c.l.b16 %v202
        %v470 = vunpack.c.l.b16 %v203
        %v471 = vunpack.c.l.b16 %v204
        %v472 = vunpack.c.l.b16 %v205
        %v473 = vunpack.c.l.b16 %v206
        %v474 = vunpack.c.l.b16 %v207
        %v475 = vunpack.c.l.b16 %v208
        %v476 = vunpack.c.l.b16 %v209
        %v477 = vunpack.c.l.b16 %v210
        %v478 = vunpack.c.l.b16 %v211
        %v479 = vunpack.c.l.b16 %v212
        %v480 = vunpack.c.l.b16 %v213
        %v481 = vunpack.c.l.b16 %v214
        %v482 = vunpack.c.l.b16 %v215
        %v483 = vunpack.c.l.b16 %v216
        %v484 = vunpack.c.l.b16 %v217
        %v485 = vunpack.c.l.b16 %v218
        %v486 = vunpack.c.l.b16 %v219
        %v487 = vunpack.c.l.b16 %v220
        %v488 = vunpack.c.l.b16 %v221
        %v489 = vunpack.c.l.b16 %v222
        %v490 = vunpack.c.l.b16 %v223
        %v491 = vunpack.c.l.b16 %v224
        %v492 = vunpack.c.l.b16 %v225
        %v493 = vunpack.c.l.b16 %v226
        %v494 = vunpack.c.l.b16 %v227
        %v495 = vunpack.c.l.b16 %v228
        %v496 = vunpack.c.l.b16 %v229
        %v497 = vunpack.c.l.b16 %v230
        %v498 = vunpack.c.l.b16 %v231
        %v499 = vunpack.c.l.b16 %v232
        %v500 = vunpack.c.l.b16 %v233
        %v501 = vunpack.c.l.b16 %v234
        %v502 = vunpack.c.l.b16 %v235
        %v503 = vunpack.c.l.b16 %v236
        %v504 = vunpack.c.l.b16 %v237
        %v505 = vunpack.c.l.b16 %v238
        %v506 = vunpack.c.l.b16 %v239
        %v507 = vunpack.c.l.b16 %v240
        %v508 = vunpack.c.l.b16 %v241
        %v509 = vunpack.c.l.b16 %v242
        %v510 = vunpack.c.l.b16 %v243
        %v511 = vunpack.c.l.b16 %v244
        %v512 = vunpack.c.l.b16 %v245
        %v513 = vunpack.c.l.b16 %v246
        %v514 = vunpack.c.l.b16 %v247
        %v515 = vunpack.c.l.b16 %v248
        %v516 = vunpack.c.l.b16 %v249
        %v517 = vunpack.c.l.b16 %v250
        %v518 = vunpack.c.l.b16 %v251
        %v519 = vunpack.c.l.b16 %v252
        %v520 = vunpack.c.l.b16 %v253
        %v521 = vunpack.c.l.b16 %v254
        %v522 = vunpack.c.l.b16 %v255
        %v523 = vunpack.c.l.b16 %v256
        %v524 = vunpack.c.l.b16 %v257
        %v525 = vunpack.c.l.b16 %v258
        %v526 = vunpack.c.l.b16 %v259
        %v527 = vunpack.c.l.b16 %v260
        %v528 = vunpack.c.l.b16 %v261
        %v529 = vunpack.c.l.b16 %v262
        %v530 = vunpack.c.l.b16 %v263
        %v531 = vunpack.c.l.b16 %v264
        %v532 = vunpack.c.l.b16 %v265
        %v533 = vunpack.c.l.b16 %v266
        %v534 = vunpack.c.l.b16 %v267
        %v535 = vunpack.c.l.b16 %v268
        %v536 = vunpack.c.l.b16 %v269
        %v537 = vunpack.c.l.b16 %v270
        %v538 = vunpack.c.l.b16 %v271
        %v539 = vunpack.c.l.b16 %v272
        %v540 = vunpack.c.l.b16 %v273
        %v541 = vunpack.c.l.b16 %v274
        %v542 = vunpack.c.l.b16 %v275
        %v543 = vunpack.c.l.b16 %v276
        %v544 = vunpack.c.l.b16 %v277
        %v545 = vunpack.c.l.b16 %v278
        %v546 = vunpack.c.l.b16 %v279
        %v547 = vunpack.c.l.b16 %v280
        %v548 = vunpack.c.l.b16 %v281
        %v549 = vunpack.c.l.b16 %v282
        %v550 = vunpack.c.l.b16 %v283
        %v551 = vunpack.c.l.b16 %v284
        %v552 = vunpack.c.l.b16 %v285
        %v553 = vunpack.c.l.b16 %v286
        %v554 = vunpack.c.l.b16 %v287
        %v555 = vunpack.c.l.b16 %v288
        %v556 = vunpack.c.l.b16 %v289
        %v557 = vunpack.c.l.b16 %v290
        %v558 = vunpack.c.l.b16 %v291
        %v559 = vunpack.c.l.b16 %v292
        %v560 = vunpack.c.l.b16 %v293
        %v561 = vunpack.c.l.b16 %v294
        %v562 = vunpack.c.l.b16 %v295
        %v563 = vunpack.c.l.b16 %v296
        %v564 = vunpack.c.l.b16 %v297
        %v565 = vunpack.c.l.b16 %v298
        %v566 = vunpack.c.l.b16 %v299
        %v567 = vunpack.c.l.b16 %v300
        %v568 = vpack.c.b16 %v441, %v440
        %v569 = vpack.c.b16 %v443, %v442
        %v570 = vpack.c.b16 %v445, %v444
        %v571 = vpack.c.b16 %v447, %v446
        %v572 = vpack.c.b16 %v449, %v448
        %v573 = vpack.c.b16 %v451, %v450
        %v574 = vpack.c.b16 %v453, %v452
        %v575 = vpack.c.b16 %v455, %v454
        %v576 = vpack.c.b16 %v457, %v456
        %v577 = vpack.c.b16 %v459, %v458
        %v578 = vpack.c.b16 %v461, %v460
        %v579 = vpack.c.b16 %v463, %v462
        %v580 = vpack.c.b16 %v465, %v464
        %v581 = vpack.c.b16 %v467, %v466
        %v582 = vpack.c.b16 %v469, %v468
        %v583 = vpack.c.b16 %v471, %v470
        %v584 = vpack.c.b16 %v473, %v472
        %v585 = vpack.c.b16 %v475, %v474
        %v586 = vpack.c.b16 %v477, %v476
        %v587 = vpack.c.b16 %v479, %v478
        %v588 = vpack.c.b16 %v481, %v480
        %v589 = vpack.c.b16 %v483, %v482
        %v590 = vpack.c.b16 %v485, %v484
        %v591 = vpack.c.b16 %v487, %v486
        %v592 = vpack.c.b16 %v489, %v488
        %v593 = vpack.c.b16 %v491, %v490
        %v594 = vpack.c.b16 %v493, %v492
        %v595 = vpack.c.b16 %v495, %v494
        %v596 = vpack.c.b16 %v497, %v496
        %v597 = vpack.c.b16 %v499, %v498
        %v598 = vpack.c.b16 %v501, %v500
        %v599 = vpack.c.b16 %v503, %v502
        %v600 = vpack.c.b16 %v505, %v504
        %v601 = vpack.c.b16 %v507, %v506
        %v602 = vpack.c.b16 %v509, %v508
        %v603 = vpack.c.b16 %v511, %v510
        %v604 = vpack.c.b16 %v513, %v512
        %v605 = vpack.c.b16 %v515, %v514
        %v606 = vpack.c.b16 %v517, %v516
        %v607 = vpack.c.b16 %v519, %v518
        %v608 = vpack.c.b16 %v521, %v520
        %v609 = vpack.c.b16 %v523, %v522
        %v610 = vpack.c.b16 %v525, %v524
        %v611 = vpack.c.b16 %v527, %v526
        %v612 = vpack.c.b16 %v529, %v528
        %v613 = vpack.c.b16 %v531, %v530
        %v614 = vpack.c.b16 %v533, %v532
        %v615 = vpack.c.b16 %v535, %v534
        %v616 = vpack.c.b16 %v537, %v536
        %v617 = vpack.c.b16 %v539, %v538
        %v618 = vpack.c.b16 %v541, %v540
        %v619 = vpack.c.b16 %v543, %v542
        %v620 = vpack.c.b16 %v545, %v544
        %v621 = vpack.c.b16 %v547, %v546
        %v622 = vpack.c.b16 %v549, %v548
        %v623 = vpack.c.b16 %v551, %v550
        %v624 = vpack.c.b16 %v553, %v552
        %v625 = vpack.c.b16 %v555, %v554
        %v626 = vpack.c.b16 %v557, %v556
        %v627 = vpack.c.b16 %v559, %v558
        %v628 = vpack.c.b16 %v561, %v560
        %v629 = vpack.c.b16 %v563, %v562
        %v630 = vpack.c.b16 %v565, %v564
        %v631 = vpack.c.b16 %v567, %v566
        %v636 = vunpack.c.l.b16 %v301
        %v637 = vunpack.c.l.b16 %v302
        %v638 = vunpack.c.l.b16 %v303
        %v639 = vunpack.c.l.b16 %v304
        %v640 = vpack.c.b16 %v637, %v636
        %v641 = vpack.c.b16 %v639, %v638
        %vm644 = vcmask 261120
        %v646 = vsel %vm644, %v568, 0
        %v649 = vsel %vm644, %v569, 0
        %v652 = vsel %vm644, %v570, 0
        %v655 = vsel %vm644, %v571, 0
        %v658 = vsel %vm644, %v572, 0
        %v661 = vsel %vm644, %v573, 0
        %v664 = vsel %vm644, %v574, 0
        %v667 = vsel %vm644, %v575, 0
        %v670 = vsel %vm644, %v576, 0
        %v673 = vsel %vm644, %v577, 0
        %v676 = vsel %vm644, %v578, 0
        %v679 = vsel %vm644, %v579, 0
        %v682 = vsel %vm644, %v580, 0
        %v685 = vsel %vm644, %v581, 0
        %v688 = vsel %vm644, %v582, 0
        %v691 = vsel %vm644, %v583, 0
        %v694 = vsel %vm644, %v584, 0
        %v697 = vsel %vm644, %v585, 0
        %v700 = vsel %vm644, %v586, 0
        %v703 = vsel %vm644, %v587, 0
        %v706 = vsel %vm644, %v588, 0
        %v709 = vsel %vm644, %v589, 0
        %v712 = vsel %vm644, %v590, 0
        %v715 = vsel %vm644, %v591, 0
        %v718 = vsel %vm644, %v592, 0
        %v721 = vsel %vm644, %v593, 0
        %v724 = vsel %vm644, %v594, 0
        %v727 = vsel %vm644, %v595, 0
        %v730 = vsel %vm644, %v596, 0
        %v733 = vsel %vm644, %v597, 0
        %v736 = vsel %vm644, %v598, 0
        %v739 = vsel %vm644, %v599, 0
        %v742 = vsel %vm644, %v600, 0
        %v745 = vsel %vm644, %v601, 0
        %v748 = vsel %vm644, %v602, 0
        %v751 = vsel %vm644, %v603, 0
        %v754 = vsel %vm644, %v604, 0
        %v757 = vsel %vm644, %v605, 0
        %v760 = vsel %vm644, %v606, 0
        %v763 = vsel %vm644, %v607, 0
        %v766 = vsel %vm644, %v608, 0
        %v769 = vsel %vm644, %v609, 0
        %v772 = vsel %vm644, %v610, 0
        %v775 = vsel %vm644, %v611, 0
        %v778 = vsel %vm644, %v612, 0
        %v781 = vsel %vm644, %v613, 0
        %v784 = vsel %vm644, %v614, 0
        %v787 = vsel %vm644, %v615, 0
        %v790 = vsel %vm644, %v616, 0
        %v793 = vsel %vm644, %v617, 0
        %v796 = vsel %vm644, %v618, 0
        %v799 = vsel %vm644, %v619, 0
        %v802 = vsel %vm644, %v620, 0
        %v805 = vsel %vm644, %v621, 0
        %v808 = vsel %vm644, %v622, 0
        %v811 = vsel %vm644, %v623, 0
        %v814 = vsel %vm644, %v624, 0
        %v817 = vsel %vm644, %v625, 0
        %v820 = vsel %vm644, %v626, 0
        %v823 = vsel %vm644, %v627, 0
        %v826 = vsel %vm644, %v628, 0
        %v829 = vsel %vm644, %v629, 0
        %v832 = vsel %vm644, %v630, 0
        %v835 = vsel %vm644, %v631, 0
        %837 = vmatprep.subr.bf16.mxu0 0
        %838 = vmatpush1.bf16.msra.mxu0 %v640
        %839 = vmatprep.subr.bf16.mxu0 0
        %840 = vmatpush1.bf16.msra.mxu0 %v641
        %841 = vmatprep.subr.bf16.mxu0 0
        %842 = vmatpush1.bf16.msra.mxu0 0
        %843 = vmatprep.subr.bf16.mxu0 0
        %844 = vmatpush1.bf16.msra.mxu0 0
        %845 = vmatprep.subr.bf16.mxu0 0
        %846 = vmatpush1.bf16.msra.mxu0 0
        %847 = vmatprep.subr.bf16.mxu0 0
        %848 = vmatpush1.bf16.msra.mxu0 0
        %849 = vmatprep.subr.bf16.mxu0 0
        %850 = vmatpush1.bf16.msra.mxu0 0
        %851 = vmatprep.subr.bf16.mxu0 0
        %852 = vmatpush1.bf16.msra.mxu0 0
        %853 = vmatprep.subr.bf16.mxu0 0
        %854 = vmatpush1.bf16.msra.mxu0 0
        %855 = vmatprep.subr.bf16.mxu0 0
        %856 = vmatpush1.bf16.msra.mxu0 0
        %857 = vmatprep.subr.bf16.mxu0 0
        %858 = vmatpush1.bf16.msra.mxu0 0
        %859 = vmatprep.subr.bf16.mxu0 0
        %860 = vmatpush1.bf16.msra.mxu0 0
        %861 = vmatprep.subr.bf16.mxu0 0
        %862 = vmatpush1.bf16.msra.mxu0 0
        %863 = vmatprep.subr.bf16.mxu0 0
        %864 = vmatpush1.bf16.msra.mxu0 0
        %865 = vmatprep.subr.bf16.mxu0 0
        %866 = vmatpush1.bf16.msra.mxu0 0
        %867 = vmatprep.subr.bf16.mxu0 0
        %868 = vmatpush1.bf16.msra.mxu0 0
        %869 = vmatprep.mubr.bf16.mxu0 0
        %870 = vmatmul.mubr.bf16.gmra.mrb[0].mxu0 %v646
        %v871 = vpop.f32.mrb[0].mxu0
        %v872 = vadd.f32 %v310, %v871
        %v873 = vpop.f32.mrb[0].mxu0
        %v874 = vpop.f32.mrb[0].mxu0
        %v875 = vadd.f32 %v310, %v874
        %v876 = vpop.f32.mrb[0].mxu0
        %877 = vmatprep.mubr.bf16.mxu0 0
        %878 = vmatmul.mubr.bf16.gmra.mrb[0].mxu0 %v649
        %v879 = vpop.f32.mrb[0].mxu0
        %v880 = vadd.f32 %v310, %v879
        %v881 = vpop.f32.mrb[0].mxu0
        %v882 = vpop.f32.mrb[0].mxu0
        %v883 = vadd.f32 %v310, %v882
        %v884 = vpop.f32.mrb[0].mxu0
        %885 = vmatprep.mubr.bf16.mxu0 0
        %886 = vmatmul.mubr.bf16.gmra.mrb[0].mxu0 %v652
        %v887 = vpop.f32.mrb[0].mxu0
        %v888 = vadd.f32 %v310, %v887
        %v889 = vpop.f32.mrb[0].mxu0
        %v890 = vpop.f32.mrb[0].mxu0
        %v891 = vadd.f32 %v310, %v890
        %v892 = vpop.f32.mrb[0].mxu0
        %893 = vmatprep.mubr.bf16.mxu0 0
        %894 = vmatmul.mubr.bf16.gmra.mrb[0].mxu0 %v655
        %v895 = vpop.f32.mrb[0].mxu0
        %v896 = vadd.f32 %v310, %v895
        %v897 = vpop.f32.mrb[0].mxu0
        %v898 = vpop.f32.mrb[0].mxu0
        %v899 = vadd.f32 %v310, %v898
        %v900 = vpop.f32.mrb[0].mxu0
        %901 = vmatprep.mubr.bf16.mxu0 0
        %902 = vmatmul.mubr.bf16.gmra.mrb[0].mxu0 %v658
        %v903 = vpop.f32.mrb[0].mxu0
        %v904 = vadd.f32 %v310, %v903
        %v905 = vpop.f32.mrb[0].mxu0
        %v906 = vpop.f32.mrb[0].mxu0
        %v907 = vadd.f32 %v310, %v906
        %v908 = vpop.f32.mrb[0].mxu0
        %909 = vmatprep.mubr.bf16.mxu0 0
        %910 = vmatmul.mubr.bf16.gmra.mrb[0].mxu0 %v661
        %v911 = vpop.f32.mrb[0].mxu0
        %v912 = vadd.f32 %v310, %v911
        %v913 = vpop.f32.mrb[0].mxu0
        %v914 = vpop.f32.mrb[0].mxu0
        %v915 = vadd.f32 %v310, %v914
        %v916 = vpop.f32.mrb[0].mxu0
        %917 = vmatprep.mubr.bf16.mxu0 0
        %918 = vmatmul.mubr.bf16.gmra.mrb[0].mxu0 %v664
        %v919 = vpop.f32.mrb[0].mxu0
        %v920 = vadd.f32 %v310, %v919
        %v921 = vpop.f32.mrb[0].mxu0
        %v922 = vpop.f32.mrb[0].mxu0
        %v923 = vadd.f32 %v310, %v922
        %v924 = vpop.f32.mrb[0].mxu0
        %925 = vmatprep.mubr.bf16.mxu0 0
        %926 = vmatmul.mubr.bf16.gmra.mrb[0].mxu0 %v667
        %v927 = vpop.f32.mrb[0].mxu0
        %v928 = vadd.f32 %v310, %v927
        %v929 = vpop.f32.mrb[0].mxu0
        %v930 = vpop.f32.mrb[0].mxu0
        %v931 = vadd.f32 %v310, %v930
        %v932 = vpop.f32.mrb[0].mxu0
        %933 = vmatprep.mubr.bf16.mxu0 0
        %934 = vmatmul.mubr.bf16.gmra.mrb[0].mxu0 %v670
        %v935 = vpop.f32.mrb[0].mxu0
        %v936 = vadd.f32 %v310, %v935
        %v937 = vpop.f32.mrb[0].mxu0
        %v938 = vpop.f32.mrb[0].mxu0
        %v939 = vadd.f32 %v310, %v938
        %v940 = vpop.f32.mrb[0].mxu0
        %941 = vmatprep.mubr.bf16.mxu0 0
        %942 = vmatmul.mubr.bf16.gmra.mrb[0].mxu0 %v673
        %v943 = vpop.f32.mrb[0].mxu0
        %v944 = vadd.f32 %v310, %v943
        %v945 = vpop.f32.mrb[0].mxu0
        %v946 = vpop.f32.mrb[0].mxu0
        %v947 = vadd.f32 %v310, %v946
        %v948 = vpop.f32.mrb[0].mxu0
        %949 = vmatprep.mubr.bf16.mxu0 0
        %950 = vmatmul.mubr.bf16.gmra.mrb[0].mxu0 %v676
        %v951 = vpop.f32.mrb[0].mxu0
        %v952 = vadd.f32 %v310, %v951
        %v953 = vpop.f32.mrb[0].mxu0
        %v954 = vpop.f32.mrb[0].mxu0
        %v955 = vadd.f32 %v310, %v954
        %v956 = vpop.f32.mrb[0].mxu0
        %957 = vmatprep.mubr.bf16.mxu0 0
        %958 = vmatmul.mubr.bf16.gmra.mrb[0].mxu0 %v679
        %v959 = vpop.f32.mrb[0].mxu0
        %v960 = vadd.f32 %v310, %v959
        %v961 = vpop.f32.mrb[0].mxu0
        %v962 = vpop.f32.mrb[0].mxu0
        %v963 = vadd.f32 %v310, %v962
        %v964 = vpop.f32.mrb[0].mxu0
        %965 = vmatprep.mubr.bf16.mxu0 0
        %966 = vmatmul.mubr.bf16.gmra.mrb[0].mxu0 %v682
        %v967 = vpop.f32.mrb[0].mxu0
        %v968 = vadd.f32 %v310, %v967
        %v969 = vpop.f32.mrb[0].mxu0
        %v970 = vpop.f32.mrb[0].mxu0
        %v971 = vadd.f32 %v310, %v970
        %v972 = vpop.f32.mrb[0].mxu0
        %973 = vmatprep.mubr.bf16.mxu0 0
        %974 = vmatmul.mubr.bf16.gmra.mrb[0].mxu0 %v685
        %v975 = vpop.f32.mrb[0].mxu0
        %v976 = vadd.f32 %v310, %v975
        %v977 = vpop.f32.mrb[0].mxu0
        %v978 = vpop.f32.mrb[0].mxu0
        %v979 = vadd.f32 %v310, %v978
        %v980 = vpop.f32.mrb[0].mxu0
        %981 = vmatprep.mubr.bf16.mxu0 0
        %982 = vmatmul.mubr.bf16.gmra.mrb[0].mxu0 %v688
        %v983 = vpop.f32.mrb[0].mxu0
        %v984 = vadd.f32 %v310, %v983
        %v985 = vpop.f32.mrb[0].mxu0
        %v986 = vpop.f32.mrb[0].mxu0
        %v987 = vadd.f32 %v310, %v986
        %v988 = vpop.f32.mrb[0].mxu0
        %989 = vmatprep.mubr.bf16.mxu0 0
        %990 = vmatmul.mubr.bf16.gmra.mrb[0].mxu0 %v691
        %v991 = vpop.f32.mrb[0].mxu0
        %v992 = vadd.f32 %v310, %v991
        %v993 = vpop.f32.mrb[0].mxu0
        %v994 = vpop.f32.mrb[0].mxu0
        %v995 = vadd.f32 %v310, %v994
        %v996 = vpop.f32.mrb[0].mxu0
        %997 = vmatprep.mubr.bf16.mxu0 0
        %998 = vmatmul.mubr.bf16.gmra.mrb[0].mxu0 %v694
        %v999 = vpop.f32.mrb[0].mxu0
        %v1000 = vadd.f32 %v310, %v999
        %v1001 = vpop.f32.mrb[0].mxu0
        %v1002 = vpop.f32.mrb[0].mxu0
        %v1003 = vadd.f32 %v310, %v1002
        %v1004 = vpop.f32.mrb[0].mxu0
        %1005 = vmatprep.mubr.bf16.mxu0 0
        %1006 = vmatmul.mubr.bf16.gmra.mrb[0].mxu0 %v697
        %v1007 = vpop.f32.mrb[0].mxu0
        %v1008 = vadd.f32 %v310, %v1007
        %v1009 = vpop.f32.mrb[0].mxu0
        %v1010 = vpop.f32.mrb[0].mxu0
        %v1011 = vadd.f32 %v310, %v1010
        %v1012 = vpop.f32.mrb[0].mxu0
        %1013 = vmatprep.mubr.bf16.mxu0 0
        %1014 = vmatmul.mubr.bf16.gmra.mrb[0].mxu0 %v700
        %v1015 = vpop.f32.mrb[0].mxu0
        %v1016 = vadd.f32 %v310, %v1015
        %v1017 = vpop.f32.mrb[0].mxu0
        %v1018 = vpop.f32.mrb[0].mxu0
        %v1019 = vadd.f32 %v310, %v1018
        %v1020 = vpop.f32.mrb[0].mxu0
        %1021 = vmatprep.mubr.bf16.mxu0 0
        %1022 = vmatmul.mubr.bf16.gmra.mrb[0].mxu0 %v703
        %v1023 = vpop.f32.mrb[0].mxu0
        %v1024 = vadd.f32 %v310, %v1023
        %v1025 = vpop.f32.mrb[0].mxu0
        %v1026 = vpop.f32.mrb[0].mxu0
        %v1027 = vadd.f32 %v310, %v1026
        %v1028 = vpop.f32.mrb[0].mxu0
        %1029 = vmatprep.mubr.bf16.mxu0 0
        %1030 = vmatmul.mubr.bf16.gmra.mrb[0].mxu0 %v706
        %v1031 = vpop.f32.mrb[0].mxu0
        %v1032 = vadd.f32 %v310, %v1031
        %v1033 = vpop.f32.mrb[0].mxu0
        %v1034 = vpop.f32.mrb[0].mxu0
        %v1035 = vadd.f32 %v310, %v1034
        %v1036 = vpop.f32.mrb[0].mxu0
        %1037 = vmatprep.mubr.bf16.mxu0 0
        %1038 = vmatmul.mubr.bf16.gmra.mrb[0].mxu0 %v709
        %v1039 = vpop.f32.mrb[0].mxu0
        %v1040 = vadd.f32 %v310, %v1039
        %v1041 = vpop.f32.mrb[0].mxu0
        %v1042 = vpop.f32.mrb[0].mxu0
        %v1043 = vadd.f32 %v310, %v1042
        %v1044 = vpop.f32.mrb[0].mxu0
        %1045 = vmatprep.mubr.bf16.mxu0 0
        %1046 = vmatmul.mubr.bf16.gmra.mrb[0].mxu0 %v712
        %v1047 = vpop.f32.mrb[0].mxu0
        %v1048 = vadd.f32 %v310, %v1047
        %v1049 = vpop.f32.mrb[0].mxu0
        %v1050 = vpop.f32.mrb[0].mxu0
        %v1051 = vadd.f32 %v310, %v1050
        %v1052 = vpop.f32.mrb[0].mxu0
        %1053 = vmatprep.mubr.bf16.mxu0 0
        %1054 = vmatmul.mubr.bf16.gmra.mrb[0].mxu0 %v715
        %v1055 = vpop.f32.mrb[0].mxu0
        %v1056 = vadd.f32 %v310, %v1055
        %v1057 = vpop.f32.mrb[0].mxu0
        %v1058 = vpop.f32.mrb[0].mxu0
        %v1059 = vadd.f32 %v310, %v1058
        %v1060 = vpop.f32.mrb[0].mxu0
        %1061 = vmatprep.mubr.bf16.mxu0 0
        %1062 = vmatmul.mubr.bf16.gmra.mrb[0].mxu0 %v718
        %v1063 = vpop.f32.mrb[0].mxu0
        %v1064 = vadd.f32 %v310, %v1063
        %v1065 = vpop.f32.mrb[0].mxu0
        %v1066 = vpop.f32.mrb[0].mxu0
        %v1067 = vadd.f32 %v310, %v1066
        %v1068 = vpop.f32.mrb[0].mxu0
        %1069 = vmatprep.mubr.bf16.mxu0 0
        %1070 = vmatmul.mubr.bf16.gmra.mrb[0].mxu0 %v721
        %v1071 = vpop.f32.mrb[0].mxu0
        %v1072 = vadd.f32 %v310, %v1071
        %v1073 = vpop.f32.mrb[0].mxu0
        %v1074 = vpop.f32.mrb[0].mxu0
        %v1075 = vadd.f32 %v310, %v1074
        %v1076 = vpop.f32.mrb[0].mxu0
        %1077 = vmatprep.mubr.bf16.mxu0 0
        %1078 = vmatmul.mubr.bf16.gmra.mrb[0].mxu0 %v724
        %v1079 = vpop.f32.mrb[0].mxu0
        %v1080 = vadd.f32 %v310, %v1079
        %v1081 = vpop.f32.mrb[0].mxu0
        %v1082 = vpop.f32.mrb[0].mxu0
        %v1083 = vadd.f32 %v310, %v1082
        %v1084 = vpop.f32.mrb[0].mxu0
        %1085 = vmatprep.mubr.bf16.mxu0 0
        %1086 = vmatmul.mubr.bf16.gmra.mrb[0].mxu0 %v727
        %v1087 = vpop.f32.mrb[0].mxu0
        %v1088 = vadd.f32 %v310, %v1087
        %v1089 = vpop.f32.mrb[0].mxu0
        %v1090 = vpop.f32.mrb[0].mxu0
        %v1091 = vadd.f32 %v310, %v1090
        %v1092 = vpop.f32.mrb[0].mxu0
        %1093 = vmatprep.mubr.bf16.mxu0 0
        %1094 = vmatmul.mubr.bf16.gmra.mrb[0].mxu0 %v730
        %v1095 = vpop.f32.mrb[0].mxu0
        %v1096 = vadd.f32 %v310, %v1095
        %v1097 = vpop.f32.mrb[0].mxu0
        %v1098 = vpop.f32.mrb[0].mxu0
        %v1099 = vadd.f32 %v310, %v1098
        %v1100 = vpop.f32.mrb[0].mxu0
        %1101 = vmatprep.mubr.bf16.mxu0 0
        %1102 = vmatmul.mubr.bf16.gmra.mrb[0].mxu0 %v733
        %v1103 = vpop.f32.mrb[0].mxu0
        %v1104 = vadd.f32 %v310, %v1103
        %v1105 = vpop.f32.mrb[0].mxu0
        %v1106 = vpop.f32.mrb[0].mxu0
        %v1107 = vadd.f32 %v310, %v1106
        %v1108 = vpop.f32.mrb[0].mxu0
        %1109 = vmatprep.mubr.bf16.mxu0 0
        %1110 = vmatmul.mubr.bf16.gmra.mrb[0].mxu0 %v736
        %v1111 = vpop.f32.mrb[0].mxu0
        %v1112 = vadd.f32 %v310, %v1111
        %v1113 = vpop.f32.mrb[0].mxu0
        %v1114 = vpop.f32.mrb[0].mxu0
        %v1115 = vadd.f32 %v310, %v1114
        %v1116 = vpop.f32.mrb[0].mxu0
        %1117 = vmatprep.mubr.bf16.mxu0 0
        %1118 = vmatmul.mubr.bf16.gmra.mrb[0].mxu0 %v739
        %v1119 = vpop.f32.mrb[0].mxu0
        %v1120 = vadd.f32 %v310, %v1119
        %v1121 = vpop.f32.mrb[0].mxu0
        %v1122 = vpop.f32.mrb[0].mxu0
        %v1123 = vadd.f32 %v310, %v1122
        %v1124 = vpop.f32.mrb[0].mxu0
        %1125 = vmatprep.mubr.bf16.mxu0 0
        %1126 = vmatmul.mubr.bf16.gmra.mrb[0].mxu0 %v742
        %v1127 = vpop.f32.mrb[0].mxu0
        %v1128 = vadd.f32 %v310, %v1127
        %v1129 = vpop.f32.mrb[0].mxu0
        %v1130 = vpop.f32.mrb[0].mxu0
        %v1131 = vadd.f32 %v310, %v1130
        %v1132 = vpop.f32.mrb[0].mxu0
        %1133 = vmatprep.mubr.bf16.mxu0 0
        %1134 = vmatmul.mubr.bf16.gmra.mrb[0].mxu0 %v745
        %v1135 = vpop.f32.mrb[0].mxu0
        %v1136 = vadd.f32 %v310, %v1135
        %v1137 = vpop.f32.mrb[0].mxu0
        %v1138 = vpop.f32.mrb[0].mxu0
        %v1139 = vadd.f32 %v310, %v1138
        %v1140 = vpop.f32.mrb[0].mxu0
        %1141 = vmatprep.mubr.bf16.mxu0 0
        %1142 = vmatmul.mubr.bf16.gmra.mrb[0].mxu0 %v748
        %v1143 = vpop.f32.mrb[0].mxu0
        %v1144 = vadd.f32 %v310, %v1143
        %v1145 = vpop.f32.mrb[0].mxu0
        %v1146 = vpop.f32.mrb[0].mxu0
        %v1147 = vadd.f32 %v310, %v1146
        %v1148 = vpop.f32.mrb[0].mxu0
        %1149 = vmatprep.mubr.bf16.mxu0 0
        %1150 = vmatmul.mubr.bf16.gmra.mrb[0].mxu0 %v751
        %v1151 = vpop.f32.mrb[0].mxu0
        %v1152 = vadd.f32 %v310, %v1151
        %v1153 = vpop.f32.mrb[0].mxu0
        %v1154 = vpop.f32.mrb[0].mxu0
        %v1155 = vadd.f32 %v310, %v1154
        %v1156 = vpop.f32.mrb[0].mxu0
        %1157 = vmatprep.mubr.bf16.mxu0 0
        %1158 = vmatmul.mubr.bf16.gmra.mrb[0].mxu0 %v754
        %v1159 = vpop.f32.mrb[0].mxu0
        %v1160 = vadd.f32 %v310, %v1159
        %v1161 = vpop.f32.mrb[0].mxu0
        %v1162 = vpop.f32.mrb[0].mxu0
        %v1163 = vadd.f32 %v310, %v1162
        %v1164 = vpop.f32.mrb[0].mxu0
        %1165 = vmatprep.mubr.bf16.mxu0 0
        %1166 = vmatmul.mubr.bf16.gmra.mrb[0].mxu0 %v757
        %v1167 = vpop.f32.mrb[0].mxu0
        %v1168 = vadd.f32 %v310, %v1167
        %v1169 = vpop.f32.mrb[0].mxu0
        %v1170 = vpop.f32.mrb[0].mxu0
        %v1171 = vadd.f32 %v310, %v1170
        %v1172 = vpop.f32.mrb[0].mxu0
        %1173 = vmatprep.mubr.bf16.mxu0 0
        %1174 = vmatmul.mubr.bf16.gmra.mrb[0].mxu0 %v760
        %v1175 = vpop.f32.mrb[0].mxu0
        %v1176 = vadd.f32 %v310, %v1175
        %v1177 = vpop.f32.mrb[0].mxu0
        %v1178 = vpop.f32.mrb[0].mxu0
        %v1179 = vadd.f32 %v310, %v1178
        %v1180 = vpop.f32.mrb[0].mxu0
        %1181 = vmatprep.mubr.bf16.mxu0 0
        %1182 = vmatmul.mubr.bf16.gmra.mrb[0].mxu0 %v763
        %v1183 = vpop.f32.mrb[0].mxu0
        %v1184 = vadd.f32 %v310, %v1183
        %v1185 = vpop.f32.mrb[0].mxu0
        %v1186 = vpop.f32.mrb[0].mxu0
        %v1187 = vadd.f32 %v310, %v1186
        %v1188 = vpop.f32.mrb[0].mxu0
        %1189 = vmatprep.mubr.bf16.mxu0 0
        %1190 = vmatmul.mubr.bf16.gmra.mrb[0].mxu0 %v766
        %v1191 = vpop.f32.mrb[0].mxu0
        %v1192 = vadd.f32 %v310, %v1191
        %v1193 = vpop.f32.mrb[0].mxu0
        %v1194 = vpop.f32.mrb[0].mxu0
        %v1195 = vadd.f32 %v310, %v1194
        %v1196 = vpop.f32.mrb[0].mxu0
        %1197 = vmatprep.mubr.bf16.mxu0 0
        %1198 = vmatmul.mubr.bf16.gmra.mrb[0].mxu0 %v769
        %v1199 = vpop.f32.mrb[0].mxu0
        %v1200 = vadd.f32 %v310, %v1199
        %v1201 = vpop.f32.mrb[0].mxu0
        %v1202 = vpop.f32.mrb[0].mxu0
        %v1203 = vadd.f32 %v310, %v1202
        %v1204 = vpop.f32.mrb[0].mxu0
        %1205 = vmatprep.mubr.bf16.mxu0 0
        %1206 = vmatmul.mubr.bf16.gmra.mrb[0].mxu0 %v772
        %v1207 = vpop.f32.mrb[0].mxu0
        %v1208 = vadd.f32 %v310, %v1207
        %v1209 = vpop.f32.mrb[0].mxu0
        %v1210 = vpop.f32.mrb[0].mxu0
        %v1211 = vadd.f32 %v310, %v1210
        %v1212 = vpop.f32.mrb[0].mxu0
        %1213 = vmatprep.mubr.bf16.mxu0 0
        %1214 = vmatmul.mubr.bf16.gmra.mrb[0].mxu0 %v775
        %v1215 = vpop.f32.mrb[0].mxu0
        %v1216 = vadd.f32 %v310, %v1215
        %v1217 = vpop.f32.mrb[0].mxu0
        %v1218 = vpop.f32.mrb[0].mxu0
        %v1219 = vadd.f32 %v310, %v1218
        %v1220 = vpop.f32.mrb[0].mxu0
        %1221 = vmatprep.mubr.bf16.mxu0 0
        %1222 = vmatmul.mubr.bf16.gmra.mrb[0].mxu0 %v778
        %v1223 = vpop.f32.mrb[0].mxu0
        %v1224 = vadd.f32 %v310, %v1223
        %v1225 = vpop.f32.mrb[0].mxu0
        %v1226 = vpop.f32.mrb[0].mxu0
        %v1227 = vadd.f32 %v310, %v1226
        %v1228 = vpop.f32.mrb[0].mxu0
        %1229 = vmatprep.mubr.bf16.mxu0 0
        %1230 = vmatmul.mubr.bf16.gmra.mrb[0].mxu0 %v781
        %v1231 = vpop.f32.mrb[0].mxu0
        %v1232 = vadd.f32 %v310, %v1231
        %v1233 = vpop.f32.mrb[0].mxu0
        %v1234 = vpop.f32.mrb[0].mxu0
        %v1235 = vadd.f32 %v310, %v1234
        %v1236 = vpop.f32.mrb[0].mxu0
        %1237 = vmatprep.mubr.bf16.mxu0 0
        %1238 = vmatmul.mubr.bf16.gmra.mrb[0].mxu0 %v784
        %v1239 = vpop.f32.mrb[0].mxu0
        %v1240 = vadd.f32 %v310, %v1239
        %v1241 = vpop.f32.mrb[0].mxu0
        %v1242 = vpop.f32.mrb[0].mxu0
        %v1243 = vadd.f32 %v310, %v1242
        %v1244 = vpop.f32.mrb[0].mxu0
        %1245 = vmatprep.mubr.bf16.mxu0 0
        %1246 = vmatmul.mubr.bf16.gmra.mrb[0].mxu0 %v787
        %v1247 = vpop.f32.mrb[0].mxu0
        %v1248 = vadd.f32 %v310, %v1247
        %v1249 = vpop.f32.mrb[0].mxu0
        %v1250 = vpop.f32.mrb[0].mxu0
        %v1251 = vadd.f32 %v310, %v1250
        %v1252 = vpop.f32.mrb[0].mxu0
        %1253 = vmatprep.mubr.bf16.mxu0 0
        %1254 = vmatmul.mubr.bf16.gmra.mrb[0].mxu0 %v790
        %v1255 = vpop.f32.mrb[0].mxu0
        %v1256 = vadd.f32 %v310, %v1255
        %v1257 = vpop.f32.mrb[0].mxu0
        %v1258 = vpop.f32.mrb[0].mxu0
        %v1259 = vadd.f32 %v310, %v1258
        %v1260 = vpop.f32.mrb[0].mxu0
        %1261 = vmatprep.mubr.bf16.mxu0 0
        %1262 = vmatmul.mubr.bf16.gmra.mrb[0].mxu0 %v793
        %v1263 = vpop.f32.mrb[0].mxu0
        %v1264 = vadd.f32 %v310, %v1263
        %v1265 = vpop.f32.mrb[0].mxu0
        %v1266 = vpop.f32.mrb[0].mxu0
        %v1267 = vadd.f32 %v310, %v1266
        %v1268 = vpop.f32.mrb[0].mxu0
        %1269 = vmatprep.mubr.bf16.mxu0 0
        %1270 = vmatmul.mubr.bf16.gmra.mrb[0].mxu0 %v796
        %v1271 = vpop.f32.mrb[0].mxu0
        %v1272 = vadd.f32 %v310, %v1271
        %v1273 = vpop.f32.mrb[0].mxu0
        %v1274 = vpop.f32.mrb[0].mxu0
        %v1275 = vadd.f32 %v310, %v1274
        %v1276 = vpop.f32.mrb[0].mxu0
        %1277 = vmatprep.mubr.bf16.mxu0 0
        %1278 = vmatmul.mubr.bf16.gmra.mrb[0].mxu0 %v799
        %v1279 = vpop.f32.mrb[0].mxu0
        %v1280 = vadd.f32 %v310, %v1279
        %v1281 = vpop.f32.mrb[0].mxu0
        %v1282 = vpop.f32.mrb[0].mxu0
        %v1283 = vadd.f32 %v310, %v1282
        %v1284 = vpop.f32.mrb[0].mxu0
        %1285 = vmatprep.mubr.bf16.mxu0 0
        %1286 = vmatmul.mubr.bf16.gmra.mrb[0].mxu0 %v802
        %v1287 = vpop.f32.mrb[0].mxu0
        %v1288 = vadd.f32 %v310, %v1287
        %v1289 = vpop.f32.mrb[0].mxu0
        %v1290 = vpop.f32.mrb[0].mxu0
        %v1291 = vadd.f32 %v310, %v1290
        %v1292 = vpop.f32.mrb[0].mxu0
        %1293 = vmatprep.mubr.bf16.mxu0 0
        %1294 = vmatmul.mubr.bf16.gmra.mrb[0].mxu0 %v805
        %v1295 = vpop.f32.mrb[0].mxu0
        %v1296 = vadd.f32 %v310, %v1295
        %v1297 = vpop.f32.mrb[0].mxu0
        %v1298 = vpop.f32.mrb[0].mxu0
        %v1299 = vadd.f32 %v310, %v1298
        %v1300 = vpop.f32.mrb[0].mxu0
        %1301 = vmatprep.mubr.bf16.mxu0 0
        %1302 = vmatmul.mubr.bf16.gmra.mrb[0].mxu0 %v808
        %v1303 = vpop.f32.mrb[0].mxu0
        %v1304 = vadd.f32 %v310, %v1303
        %v1305 = vpop.f32.mrb[0].mxu0
        %v1306 = vpop.f32.mrb[0].mxu0
        %v1307 = vadd.f32 %v310, %v1306
        %v1308 = vpop.f32.mrb[0].mxu0
        %1309 = vmatprep.mubr.bf16.mxu0 0
        %1310 = vmatmul.mubr.bf16.gmra.mrb[0].mxu0 %v811
        %v1311 = vpop.f32.mrb[0].mxu0
        %v1312 = vadd.f32 %v310, %v1311
        %v1313 = vpop.f32.mrb[0].mxu0
        %v1314 = vpop.f32.mrb[0].mxu0
        %v1315 = vadd.f32 %v310, %v1314
        %v1316 = vpop.f32.mrb[0].mxu0
        %1317 = vmatprep.mubr.bf16.mxu0 0
        %1318 = vmatmul.mubr.bf16.gmra.mrb[0].mxu0 %v814
        %v1319 = vpop.f32.mrb[0].mxu0
        %v1320 = vadd.f32 %v310, %v1319
        %v1321 = vpop.f32.mrb[0].mxu0
        %v1322 = vpop.f32.mrb[0].mxu0
        %v1323 = vadd.f32 %v310, %v1322
        %v1324 = vpop.f32.mrb[0].mxu0
        %1325 = vmatprep.mubr.bf16.mxu0 0
        %1326 = vmatmul.mubr.bf16.gmra.mrb[0].mxu0 %v817
        %v1327 = vpop.f32.mrb[0].mxu0
        %v1328 = vadd.f32 %v310, %v1327
        %v1329 = vpop.f32.mrb[0].mxu0
        %v1330 = vpop.f32.mrb[0].mxu0
        %v1331 = vadd.f32 %v310, %v1330
        %v1332 = vpop.f32.mrb[0].mxu0
        %1333 = vmatprep.mubr.bf16.mxu0 0
        %1334 = vmatmul.mubr.bf16.gmra.mrb[0].mxu0 %v820
        %v1335 = vpop.f32.mrb[0].mxu0
        %v1336 = vadd.f32 %v310, %v1335
        %v1337 = vpop.f32.mrb[0].mxu0
        %v1338 = vpop.f32.mrb[0].mxu0
        %v1339 = vadd.f32 %v310, %v1338
        %v1340 = vpop.f32.mrb[0].mxu0
        %1341 = vmatprep.mubr.bf16.mxu0 0
        %1342 = vmatmul.mubr.bf16.gmra.mrb[0].mxu0 %v823
        %v1343 = vpop.f32.mrb[0].mxu0
        %v1344 = vadd.f32 %v310, %v1343
        %v1345 = vpop.f32.mrb[0].mxu0
        %v1346 = vpop.f32.mrb[0].mxu0
        %v1347 = vadd.f32 %v310, %v1346
        %v1348 = vpop.f32.mrb[0].mxu0
        %1349 = vmatprep.mubr.bf16.mxu0 0
        %1350 = vmatmul.mubr.bf16.gmra.mrb[0].mxu0 %v826
        %v1351 = vpop.f32.mrb[0].mxu0
        %v1352 = vadd.f32 %v310, %v1351
        %v1353 = vpop.f32.mrb[0].mxu0
        %v1354 = vpop.f32.mrb[0].mxu0
        %v1355 = vadd.f32 %v310, %v1354
        %v1356 = vpop.f32.mrb[0].mxu0
        %1357 = vmatprep.mubr.bf16.mxu0 0
        %1358 = vmatmul.mubr.bf16.gmra.mrb[0].mxu0 %v829
        %v1359 = vpop.f32.mrb[0].mxu0
        %v1360 = vadd.f32 %v310, %v1359
        %v1361 = vpop.f32.mrb[0].mxu0
        %v1362 = vpop.f32.mrb[0].mxu0
        %v1363 = vadd.f32 %v310, %v1362
        %v1364 = vpop.f32.mrb[0].mxu0
        %1365 = vmatprep.mubr.bf16.mxu0 0
        %1366 = vmatmul.mubr.bf16.gmra.mrb[0].mxu0 %v832
        %v1367 = vpop.f32.mrb[0].mxu0
        %v1368 = vadd.f32 %v310, %v1367
        %v1369 = vpop.f32.mrb[0].mxu0
        %v1370 = vpop.f32.mrb[0].mxu0
        %v1371 = vadd.f32 %v310, %v1370
        %v1372 = vpop.f32.mrb[0].mxu0
        %1373 = vmatprep.mubr.bf16.mxu0 0
        %1374 = vmatmul.mubr.bf16.gmra.mrb[0].mxu0 %v835
        %v1375 = vpop.f32.mrb[0].mxu0
        %v1376 = vadd.f32 %v310, %v1375
        %v1377 = vpop.f32.mrb[0].mxu0
        %v1378 = vpop.f32.mrb[0].mxu0
        %v1379 = vadd.f32 %v310, %v1378
        %v1380 = vpop.f32.mrb[0].mxu0
        %1381 = vdwg.mxu0
        %v1382 = vmax.f32 %v872, 0.0
        %v1383 = vmax.f32 %v875, 0.0
        %v1384 = vmax.f32 %v880, 0.0
        %v1385 = vmax.f32 %v883, 0.0
        %v1386 = vmax.f32 %v888, 0.0
        %v1387 = vmax.f32 %v891, 0.0
        %v1388 = vmax.f32 %v896, 0.0
        %v1389 = vmax.f32 %v899, 0.0
        %v1390 = vmax.f32 %v904, 0.0
        %v1391 = vmax.f32 %v907, 0.0
        %v1392 = vmax.f32 %v912, 0.0
        %v1393 = vmax.f32 %v915, 0.0
        %v1394 = vmax.f32 %v920, 0.0
        %v1395 = vmax.f32 %v923, 0.0
        %v1396 = vmax.f32 %v928, 0.0
        %v1397 = vmax.f32 %v931, 0.0
        %v1398 = vmax.f32 %v936, 0.0
        %v1399 = vmax.f32 %v939, 0.0
        %v1400 = vmax.f32 %v944, 0.0
        %v1401 = vmax.f32 %v947, 0.0
        %v1402 = vmax.f32 %v952, 0.0
        %v1403 = vmax.f32 %v955, 0.0
        %v1404 = vmax.f32 %v960, 0.0
        %v1405 = vmax.f32 %v963, 0.0
        %v1406 = vmax.f32 %v968, 0.0
        %v1407 = vmax.f32 %v971, 0.0
        %v1408 = vmax.f32 %v976, 0.0
        %v1409 = vmax.f32 %v979, 0.0
        %v1410 = vmax.f32 %v984, 0.0
        %v1411 = vmax.f32 %v987, 0.0
        %v1412 = vmax.f32 %v992, 0.0
        %v1413 = vmax.f32 %v995, 0.0
        %v1414 = vmax.f32 %v1000, 0.0
        %v1415 = vmax.f32 %v1003, 0.0
        %v1416 = vmax.f32 %v1008, 0.0
        %v1417 = vmax.f32 %v1011, 0.0
        %v1418 = vmax.f32 %v1016, 0.0
        %v1419 = vmax.f32 %v1019, 0.0
        %v1420 = vmax.f32 %v1024, 0.0
        %v1421 = vmax.f32 %v1027, 0.0
        %v1422 = vmax.f32 %v1032, 0.0
        %v1423 = vmax.f32 %v1035, 0.0
        %v1424 = vmax.f32 %v1040, 0.0
        %v1425 = vmax.f32 %v1043, 0.0
        %v1426 = vmax.f32 %v1048, 0.0
        %v1427 = vmax.f32 %v1051, 0.0
        %v1428 = vmax.f32 %v1056, 0.0
        %v1429 = vmax.f32 %v1059, 0.0
        %v1430 = vmax.f32 %v1064, 0.0
        %v1431 = vmax.f32 %v1067, 0.0
        %v1432 = vmax.f32 %v1072, 0.0
        %v1433 = vmax.f32 %v1075, 0.0
        %v1434 = vmax.f32 %v1080, 0.0
        %v1435 = vmax.f32 %v1083, 0.0
        %v1436 = vmax.f32 %v1088, 0.0
        %v1437 = vmax.f32 %v1091, 0.0
        %v1438 = vmax.f32 %v1096, 0.0
        %v1439 = vmax.f32 %v1099, 0.0
        %v1440 = vmax.f32 %v1104, 0.0
        %v1441 = vmax.f32 %v1107, 0.0
        %v1442 = vmax.f32 %v1112, 0.0
        %v1443 = vmax.f32 %v1115, 0.0
        %v1444 = vmax.f32 %v1120, 0.0
        %v1445 = vmax.f32 %v1123, 0.0
        %v1446 = vmax.f32 %v1128, 0.0
        %v1447 = vmax.f32 %v1131, 0.0
        %v1448 = vmax.f32 %v1136, 0.0
        %v1449 = vmax.f32 %v1139, 0.0
        %v1450 = vmax.f32 %v1144, 0.0
        %v1451 = vmax.f32 %v1147, 0.0
        %v1452 = vmax.f32 %v1152, 0.0
        %v1453 = vmax.f32 %v1155, 0.0
        %v1454 = vmax.f32 %v1160, 0.0
        %v1455 = vmax.f32 %v1163, 0.0
        %v1456 = vmax.f32 %v1168, 0.0
        %v1457 = vmax.f32 %v1171, 0.0
        %v1458 = vmax.f32 %v1176, 0.0
        %v1459 = vmax.f32 %v1179, 0.0
        %v1460 = vmax.f32 %v1184, 0.0
        %v1461 = vmax.f32 %v1187, 0.0
        %v1462 = vmax.f32 %v1192, 0.0
        %v1463 = vmax.f32 %v1195, 0.0
        %v1464 = vmax.f32 %v1200, 0.0
        %v1465 = vmax.f32 %v1203, 0.0
        %v1466 = vmax.f32 %v1208, 0.0
        %v1467 = vmax.f32 %v1211, 0.0
        %v1468 = vmax.f32 %v1216, 0.0
        %v1469 = vmax.f32 %v1219, 0.0
        %v1470 = vmax.f32 %v1224, 0.0
        %v1471 = vmax.f32 %v1227, 0.0
        %v1472 = vmax.f32 %v1232, 0.0
        %v1473 = vmax.f32 %v1235, 0.0
        %v1474 = vmax.f32 %v1240, 0.0
        %v1475 = vmax.f32 %v1243, 0.0
        %v1476 = vmax.f32 %v1248, 0.0
        %v1477 = vmax.f32 %v1251, 0.0
        %v1478 = vmax.f32 %v1256, 0.0
        %v1479 = vmax.f32 %v1259, 0.0
        %v1480 = vmax.f32 %v1264, 0.0
        %v1481 = vmax.f32 %v1267, 0.0
        %v1482 = vmax.f32 %v1272, 0.0
        %v1483 = vmax.f32 %v1275, 0.0
        %v1484 = vmax.f32 %v1280, 0.0
        %v1485 = vmax.f32 %v1283, 0.0
        %v1486 = vmax.f32 %v1288, 0.0
        %v1487 = vmax.f32 %v1291, 0.0
        %v1488 = vmax.f32 %v1296, 0.0
        %v1489 = vmax.f32 %v1299, 0.0
        %v1490 = vmax.f32 %v1304, 0.0
        %v1491 = vmax.f32 %v1307, 0.0
        %v1492 = vmax.f32 %v1312, 0.0
        %v1493 = vmax.f32 %v1315, 0.0
        %v1494 = vmax.f32 %v1320, 0.0
        %v1495 = vmax.f32 %v1323, 0.0
        %v1496 = vmax.f32 %v1328, 0.0
        %v1497 = vmax.f32 %v1331, 0.0
        %v1498 = vmax.f32 %v1336, 0.0
        %v1499 = vmax.f32 %v1339, 0.0
        %v1500 = vmax.f32 %v1344, 0.0
        %v1501 = vmax.f32 %v1347, 0.0
        %v1502 = vmax.f32 %v1352, 0.0
        %v1503 = vmax.f32 %v1355, 0.0
        %v1504 = vmax.f32 %v1360, 0.0
        %v1505 = vmax.f32 %v1363, 0.0
        %v1506 = vmax.f32 %v1368, 0.0
        %v1507 = vmax.f32 %v1371, 0.0
        %v1508 = vmax.f32 %v1376, 0.0
        %v1509 = vmax.f32 %v1379, 0.0
        %v1510 = vpack.c.bf16 %v1383, %v1382
        %v1511 = vpack.c.bf16 %v1385, %v1384
        %v1512 = vpack.c.bf16 %v1387, %v1386
        %v1513 = vpack.c.bf16 %v1389, %v1388
        %v1514 = vpack.c.bf16 %v1391, %v1390
        %v1515 = vpack.c.bf16 %v1393, %v1392
        %v1516 = vpack.c.bf16 %v1395, %v1394
        %v1517 = vpack.c.bf16 %v1397, %v1396
        %v1518 = vpack.c.bf16 %v1399, %v1398
        %v1519 = vpack.c.bf16 %v1401, %v1400
        %v1520 = vpack.c.bf16 %v1403, %v1402
        %v1521 = vpack.c.bf16 %v1405, %v1404
        %v1522 = vpack.c.bf16 %v1407, %v1406
        %v1523 = vpack.c.bf16 %v1409, %v1408
        %v1524 = vpack.c.bf16 %v1411, %v1410
        %v1525 = vpack.c.bf16 %v1413, %v1412
        %v1526 = vpack.c.bf16 %v1415, %v1414
        %v1527 = vpack.c.bf16 %v1417, %v1416
        %v1528 = vpack.c.bf16 %v1419, %v1418
        %v1529 = vpack.c.bf16 %v1421, %v1420
        %v1530 = vpack.c.bf16 %v1423, %v1422
        %v1531 = vpack.c.bf16 %v1425, %v1424
        %v1532 = vpack.c.bf16 %v1427, %v1426
        %v1533 = vpack.c.bf16 %v1429, %v1428
        %v1534 = vpack.c.bf16 %v1431, %v1430
        %v1535 = vpack.c.bf16 %v1433, %v1432
        %v1536 = vpack.c.bf16 %v1435, %v1434
        %v1537 = vpack.c.bf16 %v1437, %v1436
        %v1538 = vpack.c.bf16 %v1439, %v1438
        %v1539 = vpack.c.bf16 %v1441, %v1440
        %v1540 = vpack.c.bf16 %v1443, %v1442
        %v1541 = vpack.c.bf16 %v1445, %v1444
        %v1542 = vpack.c.bf16 %v1447, %v1446
        %v1543 = vpack.c.bf16 %v1449, %v1448
        %v1544 = vpack.c.bf16 %v1451, %v1450
        %v1545 = vpack.c.bf16 %v1453, %v1452
        %v1546 = vpack.c.bf16 %v1455, %v1454
        %v1547 = vpack.c.bf16 %v1457, %v1456
        %v1548 = vpack.c.bf16 %v1459, %v1458
        %v1549 = vpack.c.bf16 %v1461, %v1460
        %v1550 = vpack.c.bf16 %v1463, %v1462
        %v1551 = vpack.c.bf16 %v1465, %v1464
        %v1552 = vpack.c.bf16 %v1467, %v1466
        %v1553 = vpack.c.bf16 %v1469, %v1468
        %v1554 = vpack.c.bf16 %v1471, %v1470
        %v1555 = vpack.c.bf16 %v1473, %v1472
        %v1556 = vpack.c.bf16 %v1475, %v1474
        %v1557 = vpack.c.bf16 %v1477, %v1476
        %v1558 = vpack.c.bf16 %v1479, %v1478
        %v1559 = vpack.c.bf16 %v1481, %v1480
        %v1560 = vpack.c.bf16 %v1483, %v1482
        %v1561 = vpack.c.bf16 %v1485, %v1484
        %v1562 = vpack.c.bf16 %v1487, %v1486
        %v1563 = vpack.c.bf16 %v1489, %v1488
        %v1564 = vpack.c.bf16 %v1491, %v1490
        %v1565 = vpack.c.bf16 %v1493, %v1492
        %v1566 = vpack.c.bf16 %v1495, %v1494
        %v1567 = vpack.c.bf16 %v1497, %v1496
        %v1568 = vpack.c.bf16 %v1499, %v1498
        %v1569 = vpack.c.bf16 %v1501, %v1500
        %v1570 = vpack.c.bf16 %v1503, %v1502
        %v1571 = vpack.c.bf16 %v1505, %v1504
        %v1572 = vpack.c.bf16 %v1507, %v1506
        %v1573 = vpack.c.bf16 %v1509, %v1508
        %v1638 = vunpack.c.l.b16 %v1510
        %v1639 = vunpack.c.h.b16 %v1510
        %v1640 = vunpack.c.l.b16 %v1511
        %v1641 = vunpack.c.h.b16 %v1511
        %v1642 = vunpack.c.l.b16 %v1512
        %v1643 = vunpack.c.h.b16 %v1512
        %v1644 = vunpack.c.l.b16 %v1513
        %v1645 = vunpack.c.h.b16 %v1513
        %v1646 = vunpack.c.l.b16 %v1514
        %v1647 = vunpack.c.h.b16 %v1514
        %v1648 = vunpack.c.l.b16 %v1515
        %v1649 = vunpack.c.h.b16 %v1515
        %v1650 = vunpack.c.l.b16 %v1516
        %v1651 = vunpack.c.h.b16 %v1516
        %v1652 = vunpack.c.l.b16 %v1517
        %v1653 = vunpack.c.h.b16 %v1517
        %v1654 = vunpack.c.l.b16 %v1518
        %v1655 = vunpack.c.h.b16 %v1518
        %v1656 = vunpack.c.l.b16 %v1519
        %v1657 = vunpack.c.h.b16 %v1519
        %v1658 = vunpack.c.l.b16 %v1520
        %v1659 = vunpack.c.h.b16 %v1520
        %v1660 = vunpack.c.l.b16 %v1521
        %v1661 = vunpack.c.h.b16 %v1521
        %v1662 = vunpack.c.l.b16 %v1522
        %v1663 = vunpack.c.h.b16 %v1522
        %v1664 = vunpack.c.l.b16 %v1523
        %v1665 = vunpack.c.h.b16 %v1523
        %v1666 = vunpack.c.l.b16 %v1524
        %v1667 = vunpack.c.h.b16 %v1524
        %v1668 = vunpack.c.l.b16 %v1525
        %v1669 = vunpack.c.h.b16 %v1525
        %v1670 = vunpack.c.l.b16 %v1526
        %v1671 = vunpack.c.h.b16 %v1526
        %v1672 = vunpack.c.l.b16 %v1527
        %v1673 = vunpack.c.h.b16 %v1527
        %v1674 = vunpack.c.l.b16 %v1528
        %v1675 = vunpack.c.h.b16 %v1528
        %v1676 = vunpack.c.l.b16 %v1529
        %v1677 = vunpack.c.h.b16 %v1529
        %v1678 = vunpack.c.l.b16 %v1530
        %v1679 = vunpack.c.h.b16 %v1530
        %v1680 = vunpack.c.l.b16 %v1531
        %v1681 = vunpack.c.h.b16 %v1531
        %v1682 = vunpack.c.l.b16 %v1532
        %v1683 = vunpack.c.h.b16 %v1532
        %v1684 = vunpack.c.l.b16 %v1533
        %v1685 = vunpack.c.h.b16 %v1533
        %v1686 = vunpack.c.l.b16 %v1534
        %v1687 = vunpack.c.h.b16 %v1534
        %v1688 = vunpack.c.l.b16 %v1535
        %v1689 = vunpack.c.h.b16 %v1535
        %v1690 = vunpack.c.l.b16 %v1536
        %v1691 = vunpack.c.h.b16 %v1536
        %v1692 = vunpack.c.l.b16 %v1537
        %v1693 = vunpack.c.h.b16 %v1537
        %v1694 = vunpack.c.l.b16 %v1538
        %v1695 = vunpack.c.h.b16 %v1538
        %v1696 = vunpack.c.l.b16 %v1539
        %v1697 = vunpack.c.h.b16 %v1539
        %v1698 = vunpack.c.l.b16 %v1540
        %v1699 = vunpack.c.h.b16 %v1540
        %v1700 = vunpack.c.l.b16 %v1541
        %v1701 = vunpack.c.h.b16 %v1541
        %v1702 = vunpack.c.l.b16 %v1542
        %v1703 = vunpack.c.h.b16 %v1542
        %v1704 = vunpack.c.l.b16 %v1543
        %v1705 = vunpack.c.h.b16 %v1543
        %v1706 = vunpack.c.l.b16 %v1544
        %v1707 = vunpack.c.h.b16 %v1544
        %v1708 = vunpack.c.l.b16 %v1545
        %v1709 = vunpack.c.h.b16 %v1545
        %v1710 = vunpack.c.l.b16 %v1546
        %v1711 = vunpack.c.h.b16 %v1546
        %v1712 = vunpack.c.l.b16 %v1547
        %v1713 = vunpack.c.h.b16 %v1547
        %v1714 = vunpack.c.l.b16 %v1548
        %v1715 = vunpack.c.h.b16 %v1548
        %v1716 = vunpack.c.l.b16 %v1549
        %v1717 = vunpack.c.h.b16 %v1549
        %v1718 = vunpack.c.l.b16 %v1550
        %v1719 = vunpack.c.h.b16 %v1550
        %v1720 = vunpack.c.l.b16 %v1551
        %v1721 = vunpack.c.h.b16 %v1551
        %v1722 = vunpack.c.l.b16 %v1552
        %v1723 = vunpack.c.h.b16 %v1552
        %v1724 = vunpack.c.l.b16 %v1553
        %v1725 = vunpack.c.h.b16 %v1553
        %v1726 = vunpack.c.l.b16 %v1554
        %v1727 = vunpack.c.h.b16 %v1554
        %v1728 = vunpack.c.l.b16 %v1555
        %v1729 = vunpack.c.h.b16 %v1555
        %v1730 = vunpack.c.l.b16 %v1556
        %v1731 = vunpack.c.h.b16 %v1556
        %v1732 = vunpack.c.l.b16 %v1557
        %v1733 = vunpack.c.h.b16 %v1557
        %v1734 = vunpack.c.l.b16 %v1558
        %v1735 = vunpack.c.h.b16 %v1558
        %v1736 = vunpack.c.l.b16 %v1559
        %v1737 = vunpack.c.h.b16 %v1559
        %v1738 = vunpack.c.l.b16 %v1560
        %v1739 = vunpack.c.h.b16 %v1560
        %v1740 = vunpack.c.l.b16 %v1561
        %v1741 = vunpack.c.h.b16 %v1561
        %v1742 = vunpack.c.l.b16 %v1562
        %v1743 = vunpack.c.h.b16 %v1562
        %v1744 = vunpack.c.l.b16 %v1563
        %v1745 = vunpack.c.h.b16 %v1563
        %v1746 = vunpack.c.l.b16 %v1564
        %v1747 = vunpack.c.h.b16 %v1564
        %v1748 = vunpack.c.l.b16 %v1565
        %v1749 = vunpack.c.h.b16 %v1565
        %v1750 = vunpack.c.l.b16 %v1566
        %v1751 = vunpack.c.h.b16 %v1566
        %v1752 = vunpack.c.l.b16 %v1567
        %v1753 = vunpack.c.h.b16 %v1567
        %v1754 = vunpack.c.l.b16 %v1568
        %v1755 = vunpack.c.h.b16 %v1568
        %v1756 = vunpack.c.l.b16 %v1569
        %v1757 = vunpack.c.h.b16 %v1569
        %v1758 = vunpack.c.l.b16 %v1570
        %v1759 = vunpack.c.h.b16 %v1570
        %v1760 = vunpack.c.l.b16 %v1571
        %v1761 = vunpack.c.h.b16 %v1571
        %v1762 = vunpack.c.l.b16 %v1572
        %v1763 = vunpack.c.h.b16 %v1572
        %v1764 = vunpack.c.l.b16 %v1573
        %v1765 = vunpack.c.h.b16 %v1573
        %v1766 = vpack.c.b16 %v1638, %v1638
        %v1767 = vpack.c.b16 %v1639, %v1639
        %v1768 = vpack.c.b16 %v1640, %v1640
        %v1769 = vpack.c.b16 %v1641, %v1641
        %v1770 = vpack.c.b16 %v1642, %v1642
        %v1771 = vpack.c.b16 %v1643, %v1643
        %v1772 = vpack.c.b16 %v1644, %v1644
        %v1773 = vpack.c.b16 %v1645, %v1645
        %v1774 = vpack.c.b16 %v1646, %v1646
        %v1775 = vpack.c.b16 %v1647, %v1647
        %v1776 = vpack.c.b16 %v1648, %v1648
        %v1777 = vpack.c.b16 %v1649, %v1649
        %v1778 = vpack.c.b16 %v1650, %v1650
        %v1779 = vpack.c.b16 %v1651, %v1651
        %v1780 = vpack.c.b16 %v1652, %v1652
        %v1781 = vpack.c.b16 %v1653, %v1653
        %v1782 = vpack.c.b16 %v1654, %v1654
        %v1783 = vpack.c.b16 %v1655, %v1655
        %v1784 = vpack.c.b16 %v1656, %v1656
        %v1785 = vpack.c.b16 %v1657, %v1657
        %v1786 = vpack.c.b16 %v1658, %v1658
        %v1787 = vpack.c.b16 %v1659, %v1659
        %v1788 = vpack.c.b16 %v1660, %v1660
        %v1789 = vpack.c.b16 %v1661, %v1661
        %v1790 = vpack.c.b16 %v1662, %v1662
        %v1791 = vpack.c.b16 %v1663, %v1663
        %v1792 = vpack.c.b16 %v1664, %v1664
        %v1793 = vpack.c.b16 %v1665, %v1665
        %v1794 = vpack.c.b16 %v1666, %v1666
        %v1795 = vpack.c.b16 %v1667, %v1667
        %v1796 = vpack.c.b16 %v1668, %v1668
        %v1797 = vpack.c.b16 %v1669, %v1669
        %v1798 = vpack.c.b16 %v1670, %v1670
        %v1799 = vpack.c.b16 %v1671, %v1671
        %v1800 = vpack.c.b16 %v1672, %v1672
        %v1801 = vpack.c.b16 %v1673, %v1673
        %v1802 = vpack.c.b16 %v1674, %v1674
        %v1803 = vpack.c.b16 %v1675, %v1675
        %v1804 = vpack.c.b16 %v1676, %v1676
        %v1805 = vpack.c.b16 %v1677, %v1677
        %v1806 = vpack.c.b16 %v1678, %v1678
        %v1807 = vpack.c.b16 %v1679, %v1679
        %v1808 = vpack.c.b16 %v1680, %v1680
        %v1809 = vpack.c.b16 %v1681, %v1681
        %v1810 = vpack.c.b16 %v1682, %v1682
        %v1811 = vpack.c.b16 %v1683, %v1683
        %v1812 = vpack.c.b16 %v1684, %v1684
        %v1813 = vpack.c.b16 %v1685, %v1685
        %v1814 = vpack.c.b16 %v1686, %v1686
        %v1815 = vpack.c.b16 %v1687, %v1687
        %v1816 = vpack.c.b16 %v1688, %v1688
        %v1817 = vpack.c.b16 %v1689, %v1689
        %v1818 = vpack.c.b16 %v1690, %v1690
        %v1819 = vpack.c.b16 %v1691, %v1691
        %v1820 = vpack.c.b16 %v1692, %v1692
        %v1821 = vpack.c.b16 %v1693, %v1693
        %v1822 = vpack.c.b16 %v1694, %v1694
        %v1823 = vpack.c.b16 %v1695, %v1695
        %v1824 = vpack.c.b16 %v1696, %v1696
        %v1825 = vpack.c.b16 %v1697, %v1697
        %v1826 = vpack.c.b16 %v1698, %v1698
        %v1827 = vpack.c.b16 %v1699, %v1699
        %v1828 = vpack.c.b16 %v1700, %v1700
        %v1829 = vpack.c.b16 %v1701, %v1701
        %v1830 = vpack.c.b16 %v1702, %v1702
        %v1831 = vpack.c.b16 %v1703, %v1703
        %v1832 = vpack.c.b16 %v1704, %v1704
        %v1833 = vpack.c.b16 %v1705, %v1705
        %v1834 = vpack.c.b16 %v1706, %v1706
        %v1835 = vpack.c.b16 %v1707, %v1707
        %v1836 = vpack.c.b16 %v1708, %v1708
        %v1837 = vpack.c.b16 %v1709, %v1709
        %v1838 = vpack.c.b16 %v1710, %v1710
        %v1839 = vpack.c.b16 %v1711, %v1711
        %v1840 = vpack.c.b16 %v1712, %v1712
        %v1841 = vpack.c.b16 %v1713, %v1713
        %v1842 = vpack.c.b16 %v1714, %v1714
        %v1843 = vpack.c.b16 %v1715, %v1715
        %v1844 = vpack.c.b16 %v1716, %v1716
        %v1845 = vpack.c.b16 %v1717, %v1717
        %v1846 = vpack.c.b16 %v1718, %v1718
        %v1847 = vpack.c.b16 %v1719, %v1719
        %v1848 = vpack.c.b16 %v1720, %v1720
        %v1849 = vpack.c.b16 %v1721, %v1721
        %v1850 = vpack.c.b16 %v1722, %v1722
        %v1851 = vpack.c.b16 %v1723, %v1723
        %v1852 = vpack.c.b16 %v1724, %v1724
        %v1853 = vpack.c.b16 %v1725, %v1725
        %v1854 = vpack.c.b16 %v1726, %v1726
        %v1855 = vpack.c.b16 %v1727, %v1727
        %v1856 = vpack.c.b16 %v1728, %v1728
        %v1857 = vpack.c.b16 %v1729, %v1729
        %v1858 = vpack.c.b16 %v1730, %v1730
        %v1859 = vpack.c.b16 %v1731, %v1731
        %v1860 = vpack.c.b16 %v1732, %v1732
        %v1861 = vpack.c.b16 %v1733, %v1733
        %v1862 = vpack.c.b16 %v1734, %v1734
        %v1863 = vpack.c.b16 %v1735, %v1735
        %v1864 = vpack.c.b16 %v1736, %v1736
        %v1865 = vpack.c.b16 %v1737, %v1737
        %v1866 = vpack.c.b16 %v1738, %v1738
        %v1867 = vpack.c.b16 %v1739, %v1739
        %v1868 = vpack.c.b16 %v1740, %v1740
        %v1869 = vpack.c.b16 %v1741, %v1741
        %v1870 = vpack.c.b16 %v1742, %v1742
        %v1871 = vpack.c.b16 %v1743, %v1743
        %v1872 = vpack.c.b16 %v1744, %v1744
        %v1873 = vpack.c.b16 %v1745, %v1745
        %v1874 = vpack.c.b16 %v1746, %v1746
        %v1875 = vpack.c.b16 %v1747, %v1747
        %v1876 = vpack.c.b16 %v1748, %v1748
        %v1877 = vpack.c.b16 %v1749, %v1749
        %v1878 = vpack.c.b16 %v1750, %v1750
        %v1879 = vpack.c.b16 %v1751, %v1751
        %v1880 = vpack.c.b16 %v1752, %v1752
        %v1881 = vpack.c.b16 %v1753, %v1753
        %v1882 = vpack.c.b16 %v1754, %v1754
        %v1883 = vpack.c.b16 %v1755, %v1755
        %v1884 = vpack.c.b16 %v1756, %v1756
        %v1885 = vpack.c.b16 %v1757, %v1757
        %v1886 = vpack.c.b16 %v1758, %v1758
        %v1887 = vpack.c.b16 %v1759, %v1759
        %v1888 = vpack.c.b16 %v1760, %v1760
        %v1889 = vpack.c.b16 %v1761, %v1761
        %v1890 = vpack.c.b16 %v1762, %v1762
        %v1891 = vpack.c.b16 %v1763, %v1763
        %v1892 = vpack.c.b16 %v1764, %v1764
        %v1893 = vpack.c.b16 %v1765, %v1765
        %2022 = vst [vmem:[%s164] sm:$0xf] %v1766
        %2023 = vst [vmem:[%s164 + $0x4] sm:$0xf] %v1767
        %2024 = vst [vmem:[%s164 + $0x8] sm:$0xf] %v1768
        %2025 = vst [vmem:[%s164 + $0xc] sm:$0xf] %v1769
        %2026 = vst [vmem:[%s164 + $0x10] sm:$0xf] %v1770
        %2027 = vst [vmem:[%s164 + $0x14] sm:$0xf] %v1771
        %2028 = vst [vmem:[%s164 + $0x18] sm:$0xf] %v1772
        %2029 = vst [vmem:[%s164 + $0x1c] sm:$0xf] %v1773
        %2030 = vst [vmem:[%s164 + $0x20] sm:$0xf] %v1774
        %2031 = vst [vmem:[%s164 + $0x24] sm:$0xf] %v1775
        %2032 = vst [vmem:[%s164 + $0x28] sm:$0xf] %v1776
        %2033 = vst [vmem:[%s164 + $0x2c] sm:$0xf] %v1777
        %2034 = vst [vmem:[%s164 + $0x30] sm:$0xf] %v1778
        %2035 = vst [vmem:[%s164 + $0x34] sm:$0xf] %v1779
        %2036 = vst [vmem:[%s164 + $0x38] sm:$0xf] %v1780
        %2037 = vst [vmem:[%s164 + $0x3c] sm:$0xf] %v1781
        %2038 = vst [vmem:[%s164 + $0x40] sm:$0xf] %v1782
        %2039 = vst [vmem:[%s164 + $0x44] sm:$0xf] %v1783
        %2040 = vst [vmem:[%s164 + $0x48] sm:$0xf] %v1784
        %2041 = vst [vmem:[%s164 + $0x4c] sm:$0xf] %v1785
        %2042 = vst [vmem:[%s164 + $0x50] sm:$0xf] %v1786
        %2043 = vst [vmem:[%s164 + $0x54] sm:$0xf] %v1787
        %2044 = vst [vmem:[%s164 + $0x58] sm:$0xf] %v1788
        %2045 = vst [vmem:[%s164 + $0x5c] sm:$0xf] %v1789
        %2046 = vst [vmem:[%s164 + $0x60] sm:$0xf] %v1790
        %2047 = vst [vmem:[%s164 + $0x64] sm:$0xf] %v1791
        %2048 = vst [vmem:[%s164 + $0x68] sm:$0xf] %v1792
        %2049 = vst [vmem:[%s164 + $0x6c] sm:$0xf] %v1793
        %2050 = vst [vmem:[%s164 + $0x70] sm:$0xf] %v1794
        %2051 = vst [vmem:[%s164 + $0x74] sm:$0xf] %v1795
        %2052 = vst [vmem:[%s164 + $0x78] sm:$0xf] %v1796
        %2053 = vst [vmem:[%s164 + $0x7c] sm:$0xf] %v1797
        %2054 = vst [vmem:[%s164 + $0x80] sm:$0xf] %v1798
        %2055 = vst [vmem:[%s164 + $0x84] sm:$0xf] %v1799
        %2056 = vst [vmem:[%s164 + $0x88] sm:$0xf] %v1800
        %2057 = vst [vmem:[%s164 + $0x8c] sm:$0xf] %v1801
        %2058 = vst [vmem:[%s164 + $0x90] sm:$0xf] %v1802
        %2059 = vst [vmem:[%s164 + $0x94] sm:$0xf] %v1803
        %2060 = vst [vmem:[%s164 + $0x98] sm:$0xf] %v1804
        %2061 = vst [vmem:[%s164 + $0x9c] sm:$0xf] %v1805
        %2062 = vst [vmem:[%s164 + $0xa0] sm:$0xf] %v1806
        %2063 = vst [vmem:[%s164 + $0xa4] sm:$0xf] %v1807
        %2064 = vst [vmem:[%s164 + $0xa8] sm:$0xf] %v1808
        %2065 = vst [vmem:[%s164 + $0xac] sm:$0xf] %v1809
        %2066 = vst [vmem:[%s164 + $0xb0] sm:$0xf] %v1810
        %2067 = vst [vmem:[%s164 + $0xb4] sm:$0xf] %v1811
        %2068 = vst [vmem:[%s164 + $0xb8] sm:$0xf] %v1812
        %2069 = vst [vmem:[%s164 + $0xbc] sm:$0xf] %v1813
        %2070 = vst [vmem:[%s164 + $0xc0] sm:$0xf] %v1814
        %2071 = vst [vmem:[%s164 + $0xc4] sm:$0xf] %v1815
        %2072 = vst [vmem:[%s164 + $0xc8] sm:$0xf] %v1816
        %2073 = vst [vmem:[%s164 + $0xcc] sm:$0xf] %v1817
        %2074 = vst [vmem:[%s164 + $0xd0] sm:$0xf] %v1818
        %2075 = vst [vmem:[%s164 + $0xd4] sm:$0xf] %v1819
        %2076 = vst [vmem:[%s164 + $0xd8] sm:$0xf] %v1820
        %2077 = vst [vmem:[%s164 + $0xdc] sm:$0xf] %v1821
        %2078 = vst [vmem:[%s164 + $0xe0] sm:$0xf] %v1822
        %2079 = vst [vmem:[%s164 + $0xe4] sm:$0xf] %v1823
        %2080 = vst [vmem:[%s164 + $0xe8] sm:$0xf] %v1824
        %2081 = vst [vmem:[%s164 + $0xec] sm:$0xf] %v1825
        %2082 = vst [vmem:[%s164 + $0xf0] sm:$0xf] %v1826
        %2083 = vst [vmem:[%s164 + $0xf4] sm:$0xf] %v1827
        %2084 = vst [vmem:[%s164 + $0xf8] sm:$0xf] %v1828
        %2085 = vst [vmem:[%s164 + $0xfc] sm:$0xf] %v1829
        %2086 = vst [vmem:[%s164 + $0x100] sm:$0xf] %v1830
        %2087 = vst [vmem:[%s164 + $0x104] sm:$0xf] %v1831
        %2088 = vst [vmem:[%s164 + $0x108] sm:$0xf] %v1832
        %2089 = vst [vmem:[%s164 + $0x10c] sm:$0xf] %v1833
        %2090 = vst [vmem:[%s164 + $0x110] sm:$0xf] %v1834
        %2091 = vst [vmem:[%s164 + $0x114] sm:$0xf] %v1835
        %2092 = vst [vmem:[%s164 + $0x118] sm:$0xf] %v1836
        %2093 = vst [vmem:[%s164 + $0x11c] sm:$0xf] %v1837
        %2094 = vst [vmem:[%s164 + $0x120] sm:$0xf] %v1838
        %2095 = vst [vmem:[%s164 + $0x124] sm:$0xf] %v1839
        %2096 = vst [vmem:[%s164 + $0x128] sm:$0xf] %v1840
        %2097 = vst [vmem:[%s164 + $0x12c] sm:$0xf] %v1841
        %2098 = vst [vmem:[%s164 + $0x130] sm:$0xf] %v1842
        %2099 = vst [vmem:[%s164 + $0x134] sm:$0xf] %v1843
        %2100 = vst [vmem:[%s164 + $0x138] sm:$0xf] %v1844
        %2101 = vst [vmem:[%s164 + $0x13c] sm:$0xf] %v1845
        %2102 = vst [vmem:[%s164 + $0x140] sm:$0xf] %v1846
        %2103 = vst [vmem:[%s164 + $0x144] sm:$0xf] %v1847
        %2104 = vst [vmem:[%s164 + $0x148] sm:$0xf] %v1848
        %2105 = vst [vmem:[%s164 + $0x14c] sm:$0xf] %v1849
        %2106 = vst [vmem:[%s164 + $0x150] sm:$0xf] %v1850
        %2107 = vst [vmem:[%s164 + $0x154] sm:$0xf] %v1851
        %2108 = vst [vmem:[%s164 + $0x158] sm:$0xf] %v1852
        %2109 = vst [vmem:[%s164 + $0x15c] sm:$0xf] %v1853
        %2110 = vst [vmem:[%s164 + $0x160] sm:$0xf] %v1854
        %2111 = vst [vmem:[%s164 + $0x164] sm:$0xf] %v1855
        %2112 = vst [vmem:[%s164 + $0x168] sm:$0xf] %v1856
        %2113 = vst [vmem:[%s164 + $0x16c] sm:$0xf] %v1857
        %2114 = vst [vmem:[%s164 + $0x170] sm:$0xf] %v1858
        %2115 = vst [vmem:[%s164 + $0x174] sm:$0xf] %v1859
        %2116 = vst [vmem:[%s164 + $0x178] sm:$0xf] %v1860
        %2117 = vst [vmem:[%s164 + $0x17c] sm:$0xf] %v1861
        %2118 = vst [vmem:[%s164 + $0x180] sm:$0xf] %v1862
        %2119 = vst [vmem:[%s164 + $0x184] sm:$0xf] %v1863
        %2120 = vst [vmem:[%s164 + $0x188] sm:$0xf] %v1864
        %2121 = vst [vmem:[%s164 + $0x18c] sm:$0xf] %v1865
        %2122 = vst [vmem:[%s164 + $0x190] sm:$0xf] %v1866
        %2123 = vst [vmem:[%s164 + $0x194] sm:$0xf] %v1867
        %2124 = vst [vmem:[%s164 + $0x198] sm:$0xf] %v1868
        %2125 = vst [vmem:[%s164 + $0x19c] sm:$0xf] %v1869
        %2126 = vst [vmem:[%s164 + $0x1a0] sm:$0xf] %v1870
        %2127 = vst [vmem:[%s164 + $0x1a4] sm:$0xf] %v1871
        %2128 = vst [vmem:[%s164 + $0x1a8] sm:$0xf] %v1872
        %2129 = vst [vmem:[%s164 + $0x1ac] sm:$0xf] %v1873
        %2130 = vst [vmem:[%s164 + $0x1b0] sm:$0xf] %v1874
        %2131 = vst [vmem:[%s164 + $0x1b4] sm:$0xf] %v1875
        %2132 = vst [vmem:[%s164 + $0x1b8] sm:$0xf] %v1876
        %2133 = vst [vmem:[%s164 + $0x1bc] sm:$0xf] %v1877
        %2134 = vst [vmem:[%s164 + $0x1c0] sm:$0xf] %v1878
        %2135 = vst [vmem:[%s164 + $0x1c4] sm:$0xf] %v1879
        %2136 = vst [vmem:[%s164 + $0x1c8] sm:$0xf] %v1880
        %2137 = vst [vmem:[%s164 + $0x1cc] sm:$0xf] %v1881
        %2138 = vst [vmem:[%s164 + $0x1d0] sm:$0xf] %v1882
        %2139 = vst [vmem:[%s164 + $0x1d4] sm:$0xf] %v1883
        %2140 = vst [vmem:[%s164 + $0x1d8] sm:$0xf] %v1884
        %2141 = vst [vmem:[%s164 + $0x1dc] sm:$0xf] %v1885
        %2142 = vst [vmem:[%s164 + $0x1e0] sm:$0xf] %v1886
        %2143 = vst [vmem:[%s164 + $0x1e4] sm:$0xf] %v1887
        %2144 = vst [vmem:[%s164 + $0x1e8] sm:$0xf] %v1888
        %2145 = vst [vmem:[%s164 + $0x1ec] sm:$0xf] %v1889
        %2146 = vst [vmem:[%s164 + $0x1f0] sm:$0xf] %v1890
        %2147 = vst [vmem:[%s164 + $0x1f4] sm:$0xf] %v1891
        %2148 = vst [vmem:[%s164 + $0x1f8] sm:$0xf] %v1892
        %2149 = vst [vmem:[%s164 + $0x1fc] sm:$0xf] %v1893
        %s2150 = sand.u32 %s93, 1
        %s2151 = scalar_lea.sflag [#allocation3], %s2150
        %s2152 = sand.u32 %s93, 1
        %s2153 = smul.addr %s2152, 512
        %s2154 = scalar_lea.vmem [#allocation2], %s2153
        // Predicated region
        $region33: #{tpu_custom_call.1} parent=31 // pred_check
          %p2155 = pneg %p103
        $region34: #{tpu_custom_call.1} parent=31 // pred_check_branch
          %2157 = sbr.rel (%p2155) target = $region36
        $region35: #{tpu_custom_call.1} parent=31 // pred_region
          %s2158 = smul.u32 128, %s17
          %s2160 = ssub.s32 8192, 8192
          %2161 = vsyncadd %s2151, %s2160
          %s2162 = smul.addr %s2158, 64
          %s2163 = scalar_lea.hbm %s3, %s2162
          %s2164 = sshll.u32 %s2154, 4
          %s2165 = int_to_ptr.vmem [resolvable:$true] %s2164
          %2170 = dma.vmem_to_hbm [thread:$0]  %s2165, 8192, %s2163, %s2151, 64, 64, 4
        $region36: #{tpu_custom_call.1} parent=31 // pred_fallthru
          _
      $region32: #{tpu_custom_call.1} parent=5 // pred_fallthru
        _
      %p2171 = scmp.le.s32.totalorder 2, %s12
      // Predicated region
      $region37: #{tpu_custom_call.1} parent=5 // pred_check
        %p2172 = pneg %p2171
      $region38: #{tpu_custom_call.1} parent=5 // pred_check_branch
        %2174 = sbr.rel (%p2172) target = $region40
      $region39: #{tpu_custom_call.1} parent=5 // pred_region
        %s2175 = ssub.s32 %s12, 2
        // Predicated region
        $region41: #{tpu_custom_call.1} parent=39 // pred_check
          %p2176 = pneg %p109
        $region42: #{tpu_custom_call.1} parent=39 // pred_check_branch
          %2178 = sbr.rel (%p2176) target = $region44
        $region43: #{tpu_custom_call.1} parent=39 // pred_region
          %s2179 = sand.u32 %s94, 1
          %s2180 = scalar_lea.sflag [#allocation3], %s2179
          %s2181 = sand.u32 %s94, 1
          %s2182 = smul.addr %s2181, 512
          %s2183 = scalar_lea.vmem [#allocation2], %s2182
          %2184 = dma.done %s2180, 8192
        $region44: #{tpu_custom_call.1} parent=39 // pred_fallthru
          _
      $region40: #{tpu_custom_call.1} parent=5 // pred_fallthru
        _
    $region6: #{tpu_custom_call.1} parent=1 // loop_footer
      %s16 = sadd.s32 1, %s12
    $region7: #{tpu_custom_call.1} parent=1 // loop_footer_branch
      %11 = sbr.rel target = $region3
    $region8: #{tpu_custom_call.1} parent=1 // loop_exit
      _
    %2185 = vsyncpa [#allocation3], 1
    %s2186 = scalar_lea.sflag [#allocation3], 1
    %2187 = vsyncpa %s2186, 1

</llo_original>
